<compile_context>
chip_gen: v7x
topology: tpu7x:2x2x1
jax: 0.10.0
libtpu: 0.0.40
codegen_flags: <defaults>
</compile_context>

<pallas_src>
import functools

import jax
import jax.numpy as jnp
from jax import lax
from jax.experimental import pallas as pl
from jax.experimental.pallas import tpu as pltpu


_LANE = 128          # feature/output axes padded to multiples of this
_SUBLANE = 8         # batch axis padded to multiples of this
_TJ = 128            # nominal j-chunk width for the pairwise-rank loop
_MIB = 1024 * 1024


def _round_up(n, m):
    return ((n + m - 1) // m) * m


def _pow2_floor(n):
    p = 1
    while p * 2 <= n:
        p *= 2
    return p


def _pow2_ceil(n):
    p = 1
    while p < n:
        p *= 2
    return p


@functools.lru_cache(maxsize=None)
def _hw_config():
    """(vmem_budget_bytes, rank_elems, to_tile) derived per TPU generation."""
    vmem_cap = None
    try:
        vmem_cap = int(pltpu.get_tpu_info().vmem_capacity_bytes)
    except Exception:
        vmem_cap = None
    kind = ""
    try:
        kind = jax.devices()[0].device_kind.lower()
    except Exception:
        pass
    old_gen = any(t in kind for t in ("v2", "v3", "v4", "v5"))   # 128-wide MXU
    big_vmem = old_gen or ("v6" in kind)                          # 128 MiB VMEM
    if vmem_cap is None:
        vmem_cap = 128 * _MIB if big_vmem else 64 * _MIB          # v7x/unknown: 64 MiB
    # Leave ~24 MiB headroom for compiler-internal scratch; cap at 80% of capacity.
    vmem_budget = max(32 * _MIB, min(vmem_cap - 24 * _MIB, int(vmem_cap * 0.80)))
    # Budget for kernel-1 row tiles: keep TB*Dp at/below this many elements so the
    # handful of live (TB, TJ, Dp) f32 rank temporaries stays well inside VMEM.
    rank_elems = 16 * 1024 if vmem_cap >= 96 * _MIB else 8 * 1024
    # v6e/v7x MXUs are 256 wide; v5e (and older) are 128 wide.
    to_tile = 128 if old_gen else 256
    return vmem_budget, rank_elems, to_tile


# ---------------------------------------------------------------------------
# Kernel 1: fuzzy membership + OWA rank weighting (per batch row-block).
# ---------------------------------------------------------------------------
def _membership_owa_kernel(x_ref, center_ref, sharp_ref, mu_ref, a_ref, mur_ref,
                           *, input_dim, top_k, use_owa, tj, unroll):
    """mu = sigmoid(sharpness * (x - center));  a = owa_weighted(mu) * x."""
    x = x_ref[...]                                          # (TB, Dp) f32
    mu = jax.nn.sigmoid(sharp_ref[...] * (x - center_ref[...]))
    mu_ref[...] = mu

    if not use_owa:
        a_ref[...] = (mu * x).astype(a_ref.dtype)
        return

    tb, dp = x.shape
    lane = lax.broadcasted_iota(jnp.int32, (1, dp), 1)      # feature index i
    # Padded lanes get a sentinel strictly below every sigmoid output so they
    # always rank after the real features and never steal top-k slots.
    if input_dim < dp:
        mu_r = jnp.where(lane < input_dim, mu, -1.0)
    else:
        mu_r = mu
    mur_ref[...] = mu_r                                     # VMEM copy for pl.ds slicing

    # Loop-invariant pieces hoisted out of the j-chunk loop (broadcast_in_dim is
    # not CSE'd inside loops).
    mu_i = mu_r[:, None, :]                                 # (TB, 1, Dp)
    ii = lax.broadcasted_iota(jnp.int32, (1, 1, dp), 2)     # global i index
    jj_base = lax.broadcasted_iota(jnp.int32, (1, tj, 1), 1)
    n_chunks = dp // tj

    def chunk_body(c, rank_acc):
        j0 = pl.multiple_of(c * tj, tj)
        mu_j = mur_ref[:, pl.ds(j0, tj)][:, :, None]        # (TB, TJ, 1): j on sublanes
        jj = jj_base + j0                                   # global j index
        # Fused "j ranks before i" predicate -> single cast (VALU is the binding
        # unit of this loop).  Reduce over the j (sublane) axis; result lands in
        # the (TB, Dp) accumulator layout with no relayout.
        before = jnp.logical_or(mu_j > mu_i,
                                jnp.logical_and(mu_j == mu_i, jj < ii))
        return rank_acc + jnp.sum(before.astype(jnp.float32), axis=1)

    rank = lax.fori_loop(0, n_chunks, chunk_body,
                         jnp.zeros((tb, dp), jnp.float32), unroll=unroll)

    # OWA weights = linspace(1.0, 0.1, top_k) / sum(...), indexed analytically by
    # rank (no in-kernel gather).
    if top_k > 1:
        step = 0.9 / (top_k - 1)
        wsum = 0.55 * top_k                  # sum of linspace(1.0, 0.1, top_k)
    else:
        step = 0.0
        wsum = 1.0
    w_rank = (1.0 - step * rank) * (1.0 / wsum)
    if top_k >= input_dim:
        # Every real feature passes the top-k filter (default top_k=None path).
        # Padded lanes are zeroed because x is zero-padded.
        mu_used = w_rank * mu
    else:
        mu_used = jnp.where(rank < float(top_k), w_rank * mu, 0.0)
    a_ref[...] = (mu_used * x).astype(a_ref.dtype)


# ---------------------------------------------------------------------------
# Kernel 2a: z = ReLU(a @ W^T + bias) per (TB2, TO) tile, accumulating the
# per-feature batch sum / sum-of-squares across the (arbitrary) batch axis.
# ---------------------------------------------------------------------------
def _matmul_stats_kernel(a_ref, wt_ref, bias_ref, z_ref, s1_ref, s2_ref,
                         *, batch, tb2, need_row_mask):
    bi = pl.program_id(1)

    @pl.when(bi == 0)
    def _():
        s1_ref[...] = jnp.zeros_like(s1_ref)
        s2_ref[...] = jnp.zeros_like(s2_ref)

    # Operands are already stored in the matmul dtype (no per-step recasts).
    z = jnp.dot(a_ref[...], wt_ref[...], preferred_element_type=jnp.float32)
    z = jnp.maximum(z + bias_ref[...], 0.0)                 # bias + ReLU, f32
    z_ref[...] = z

    if need_row_mask:
        # Batch was padded: padded rows carry ReLU(bias) and must not pollute the
        # batch statistics (their y rows are garbage and sliced off outside).
        row = lax.broadcasted_iota(jnp.int32, (tb2, 1), 0) + bi * tb2
        zs = jnp.where(row < batch, z, 0.0)
    else:
        zs = z
    s1_ref[...] += jnp.sum(zs, axis=0, keepdims=True)
    s2_ref[...] += jnp.sum(zs * z, axis=0, keepdims=True)   # (z*mask)*z == z^2*mask


# ---------------------------------------------------------------------------
# Kernel 2b: normalize with the batch statistics (BatchNorm1d training mode,
# gamma=1, beta=0, biased variance).
# ---------------------------------------------------------------------------
def _bn_normalize_kernel(z_ref, s1_ref, s2_ref, y_ref, *, batch, eps):
    inv_b = 1.0 / batch
    mean = s1_ref[...] * inv_b
    var = jnp.maximum(s2_ref[...] * inv_b - mean * mean, 0.0)
    y_ref[...] = (z_ref[...] - mean) * lax.rsqrt(var + eps)


# ---------------------------------------------------------------------------
# Parameter prep + forward.
# ---------------------------------------------------------------------------
def prepare_params(base_weight, bias, center, sharpness, matmul_dtype=jnp.float32):
    """One-time parameter prep: transpose the weight to (D, O), cast to the matmul
    dtype and zero-pad feature/output axes to lane-dense tile multiples.  Call
    once at layer construction so the per-call hot path does no transposes/casts."""
    _, _, to_tile = _hw_config()
    out_dim, in_dim = base_weight.shape
    dp = _round_up(in_dim, _LANE)
    to = min(to_tile, _round_up(out_dim, _LANE))
    op = _round_up(out_dim, to)
    wt = jnp.zeros((dp, op), matmul_dtype).at[:in_dim, :out_dim].set(
        jnp.asarray(base_weight, jnp.float32).T.astype(matmul_dtype))
    bias_p = jnp.zeros((1, op), jnp.float32).at[0, :out_dim].set(
        jnp.asarray(bias, jnp.float32))
    center_p = jnp.zeros((1, dp), jnp.float32).at[0, :in_dim].set(
        jnp.asarray(center, jnp.float32))
    sharp_p = jnp.zeros((1, dp), jnp.float32).at[0, :in_dim].set(
        jnp.asarray(sharpness, jnp.float32))
    return dict(wt=wt, bias=bias_p, center=center_p, sharp=sharp_p,
                input_dim=in_dim, output_dim=out_dim, to_tile=to,
                matmul_dtype=matmul_dtype)


def fuzzy_sigmoid_forward(x, params, top_k=None, use_owa=True):
    """Forward pass.  Returns (normalized output, fuzzy membership mu)."""
    vmem_budget, rank_elems, _ = _hw_config()
    in_dim = params["input_dim"]
    out_dim = params["output_dim"]
    wt, bias_p = params["wt"], params["bias"]
    center_p, sharp_p = params["center"], params["sharp"]
    matmul_dtype = params["matmul_dtype"]
    to = params["to_tile"]
    dp, op = wt.shape
    b = x.shape[0]
    tk = in_dim if top_k is None else int(top_k)

    # Row tiles (powers of two so both kernels share one padded batch length):
    # tb bounded by the rank-temp budget, tb2 by a 256-row matmul block.
    bp_cap = _pow2_ceil(_round_up(b, _SUBLANE))
    tb = min(bp_cap, max(_SUBLANE, _pow2_floor(max(_SUBLANE, rank_elems // dp))))
    tb2 = min(bp_cap, 256)
    bp = _round_up(b, max(tb, tb2))

    # j-chunk width: shrink for very large Dp so (TB, TJ, Dp) temps stay bounded.
    tj = min(_TJ, dp)
    while tb * tj * dp > rank_elems * _TJ and tj > 32:
        tj //= 2
    n_chunks = dp // tj
    unroll = n_chunks if n_chunks <= 4 else 2   # bounded unroll for big Dp

    xp = jnp.zeros((bp, dp), jnp.float32).at[:b, :in_dim].set(
        jnp.asarray(x, jnp.float32))

    # ---- kernel 1: membership + OWA rank weighting, gridded over batch blocks.
    k1 = functools.partial(_membership_owa_kernel, input_dim=in_dim, top_k=tk,
                           use_owa=use_owa, tj=tj, unroll=unroll)
    mu_p, a_p = pl.pallas_call(
        k1,
        out_shape=(jax.ShapeDtypeStruct((bp, dp), jnp.float32),
                   jax.ShapeDtypeStruct((bp, dp), matmul_dtype)),
        grid_spec=pltpu.PrefetchScalarGridSpec(
            num_scalar_prefetch=0,
            grid=(bp // tb,),
            in_specs=[pl.BlockSpec((tb, dp), lambda i: (i, 0)),
                      pl.BlockSpec((1, dp), lambda i: (0, 0)),
                      pl.BlockSpec((1, dp), lambda i: (0, 0))],
            out_specs=[pl.BlockSpec((tb, dp), lambda i: (i, 0)),
                       pl.BlockSpec((tb, dp), lambda i: (i, 0))],
            scratch_shapes=[pltpu.VMEM((tb, dp), jnp.float32)]),
        compiler_params=pltpu.CompilerParams(
            dimension_semantics=("parallel",),
            vmem_limit_bytes=vmem_budget),
    )(xp, center_p, sharp_p)

    # ---- kernel 2a: matmul + bias + ReLU + batch-stat accumulation.
    n_o = op // to
    n_b = bp // tb2
    k2 = functools.partial(_matmul_stats_kernel, batch=b, tb2=tb2,
                           need_row_mask=(bp != b))
    z_p, s1, s2 = pl.pallas_call(
        k2,
        out_shape=(jax.ShapeDtypeStruct((bp, op), jnp.float32),
                   jax.ShapeDtypeStruct((1, op), jnp.float32),
                   jax.ShapeDtypeStruct((1, op), jnp.float32)),
        grid_spec=pltpu.PrefetchScalarGridSpec(
            num_scalar_prefetch=0,
            grid=(n_o, n_b),
            in_specs=[pl.BlockSpec((tb2, dp), lambda o, bi: (bi, 0)),
                      pl.BlockSpec((dp, to), lambda o, bi: (0, o)),
                      pl.BlockSpec((1, to), lambda o, bi: (0, o))],
            out_specs=[pl.BlockSpec((tb2, to), lambda o, bi: (bi, o)),
                       pl.BlockSpec((1, to), lambda o, bi: (0, o)),
                       pl.BlockSpec((1, to), lambda o, bi: (0, o))]),
        compiler_params=pltpu.CompilerParams(
            dimension_semantics=("parallel", "arbitrary"),
            vmem_limit_bytes=vmem_budget),
    )(a_p, wt, bias_p)

    # ---- kernel 2b: normalize z with the batch statistics.
    k3 = functools.partial(_bn_normalize_kernel, batch=b, eps=1e-5)
    y_p = pl.pallas_call(
        k3,
        out_shape=jax.ShapeDtypeStruct((bp, op), jnp.float32),
        grid_spec=pltpu.PrefetchScalarGridSpec(
            num_scalar_prefetch=0,
            grid=(n_o, n_b),
            in_specs=[pl.BlockSpec((tb2, to), lambda o, bi: (bi, o)),
                      pl.BlockSpec((1, to), lambda o, bi: (0, o)),
                      pl.BlockSpec((1, to), lambda o, bi: (0, o))],
            out_specs=pl.BlockSpec((tb2, to), lambda o, bi: (bi, o))),
        compiler_params=pltpu.CompilerParams(
            dimension_semantics=("parallel", "parallel"),
            vmem_limit_bytes=vmem_budget),
    )(z_p, s1, s2)

    return y_p[:b, :out_dim], mu_p[:b, :in_dim]


# ---------------------------------------------------------------------------
# Pure-JAX reference mirroring the PyTorch forward (sort + scatter).
# ---------------------------------------------------------------------------
def _reference(x, base_weight, bias, center, sharpness, top_k=None, use_owa=True,
               matmul_dtype=jnp.float32):
    b, d = x.shape
    mu = jax.nn.sigmoid(sharpness[None, :] * (x - center[None, :]))
    tk = d if top_k is None else int(top_k)
    if use_owa:
        order = jnp.argsort(-mu, axis=1)                    # stable descending
        sorted_vals = jnp.take_along_axis(mu, order, axis=1)
        w = jnp.linspace(1.0, 0.1, tk)
        w = w / jnp.sum(w)
        rows = jnp.arange(b)[:, None]
        mu_used = jnp.zeros_like(mu).at[rows, order[:, :tk]].set(
            w[None, :] * sorted_vals[:, :tk])
    else:
        mu_used = mu
    a = (mu_used * x).astype(matmul_dtype)
    out = jnp.dot(a, base_weight.T.astype(matmul_dtype),
                  preferred_element_type=jnp.float32) + bias[None, :]
    out = jnp.maximum(out, 0.0)
    mean = jnp.mean(out, axis=0, keepdims=True)
    var = jnp.mean((out - mean) ** 2, axis=0, keepdims=True)
    y = (out - mean) / jnp.sqrt(var + 1e-5)
    return y, mu


if __name__ == "__main__":
    root = jax.random.PRNGKey(0)
    configs = [
        dict(B=8, D=32, O=16, top_k=None, use_owa=True, dtype=jnp.float32, tol=1e-3),
        dict(B=8, D=32, O=16, top_k=None, use_owa=False, dtype=jnp.float32, tol=1e-3),
        dict(B=48, D=200, O=130, top_k=7, use_owa=True, dtype=jnp.float32, tol=1e-3),
        dict(B=16, D=160, O=40, top_k=3, use_owa=True, dtype=jnp.bfloat16, tol=1e-2),
    ]
    for idx, cfg in enumerate(configs):
        key = jax.random.fold_in(root, idx)
        k1, k2, k3 = jax.random.split(key, 3)
        B, D, O = cfg["B"], cfg["D"], cfg["O"]

        x = jax.random.normal(k1, (B, D), dtype=jnp.float32)
        base_weight = jax.random.normal(k2, (O, D), dtype=jnp.float32) * 0.1
        bias = jnp.zeros((O,), jnp.float32)
        center = jax.random.normal(k3, (D,), dtype=jnp.float32)
        sharpness = jnp.ones((D,), jnp.float32)

        params = prepare_params(base_weight, bias, center, sharpness,
                                matmul_dtype=cfg["dtype"])
        y, mu = fuzzy_sigmoid_forward(x, params, top_k=cfg["top_k"],
                                      use_owa=cfg["use_owa"])
        jax.block_until_ready((y, mu))
        assert y.shape == (B, O) and mu.shape == (B, D)

        y_ref, mu_ref = _reference(x, base_weight, bias, center, sharpness,
                                   top_k=cfg["top_k"], use_owa=cfg["use_owa"],
                                   matmul_dtype=cfg["dtype"])
        assert jnp.allclose(mu, mu_ref, atol=1e-5, rtol=1e-5), f"mu mismatch (cfg {idx})"
        tol = cfg["tol"]
        assert jnp.allclose(y, y_ref, atol=tol, rtol=tol), f"y mismatch (cfg {idx})"

    print("KERNEL_OK")
</pallas_src>

<mosaic_0001>
module attributes {stable_mosaic.version = 11 : i64} {
  func.func @_membership_owa_kernel(%arg0: i32, %arg1: memref<8x128xf32, #tpu.memory_space<vmem>>, %arg2: memref<1x128xf32, #tpu.memory_space<vmem>>, %arg3: memref<1x128xf32, #tpu.memory_space<vmem>>, %arg4: memref<8x128xf32, #tpu.memory_space<vmem>>, %arg5: memref<8x128xf32, #tpu.memory_space<vmem>>, %arg6: memref<8x128xf32, #tpu.memory_space<vmem>>) attributes {dimension_semantics = [#tpu.dimension_semantics<parallel>], iteration_bounds = array<i64: 1>, scalar_prefetch = 0 : i64, scratch_operands = 1 : i64, tpu.core_type = #tpu.core_type<tc>, window_params = [{transform_indices = @transform_0, window_bounds = array<i64: 8, 128>}, {pipeline_mode = #tpu.pipeline_mode<synchronous>, transform_indices = @transform_1, window_bounds = array<i64: 1, 128>}, {pipeline_mode = #tpu.pipeline_mode<synchronous>, transform_indices = @transform_2, window_bounds = array<i64: 1, 128>}, {transform_indices = @transform_3, window_bounds = array<i64: 8, 128>}, {transform_indices = @transform_4, window_bounds = array<i64: 8, 128>}]} {
    %c0 = arith.constant 0 : index
    %c0_0 = arith.constant 0 : index
    %0 = vector.load %arg1[%c0, %c0_0] : memref<8x128xf32, #tpu.memory_space<vmem>>, vector<8x128xf32>
    %c0_1 = arith.constant 0 : index
    %c0_2 = arith.constant 0 : index
    %1 = vector.load %arg3[%c0_1, %c0_2] : memref<1x128xf32, #tpu.memory_space<vmem>>, vector<1x128xf32>
    %c0_3 = arith.constant 0 : index
    %c0_4 = arith.constant 0 : index
    %2 = vector.load %arg2[%c0_3, %c0_4] : memref<1x128xf32, #tpu.memory_space<vmem>>, vector<1x128xf32>
    %3 = vector.broadcast %2 : vector<1x128xf32> to vector<8x128xf32>
    %4 = arith.subf %0, %3 : vector<8x128xf32>
    %5 = vector.broadcast %1 : vector<1x128xf32> to vector<8x128xf32>
    %6 = arith.mulf %5, %4 : vector<8x128xf32>
    %7 = arith.negf %6 : vector<8x128xf32>
    %8 = math.exp %7 : vector<8x128xf32>
    %cst = arith.constant 1.000000e+00 : f32
    %9 = vector.broadcast %cst : f32 to vector<8x128xf32>
    %10 = arith.addf %9, %8 : vector<8x128xf32>
    %11 = arith.divf %9, %10 : vector<8x128xf32>
    %c0_5 = arith.constant 0 : index
    %c0_6 = arith.constant 0 : index
    %12 = vector.load %arg4[%c0_5, %c0_6] : memref<8x128xf32, #tpu.memory_space<vmem>>, vector<8x128xf32>
    tpu.vector_store %arg4[%c0_5, %c0_6], %11 {strides = array<i32>} : memref<8x128xf32, #tpu.memory_space<vmem>>, vector<8x128xf32>,
    %13 = tpu.iota {dimensions = array<i32: 1>} : vector<1x128xi32>
    %c32_i32 = arith.constant 32 : i32
    %14 = vector.broadcast %c32_i32 : i32 to vector<1x128xi32>
    %15 = arith.cmpi slt, %13, %14 : vector<1x128xi32>
    %cst_7 = arith.constant -1.000000e+00 : f32
    %16 = vector.shape_cast %15 : vector<1x128xi1> to vector<1x128xi1>
    %17 = vector.broadcast %16 : vector<1x128xi1> to vector<8x128xi1>
    %18 = vector.broadcast %cst_7 : f32 to vector<8x128xf32>
    %19 = arith.select %17, %11, %18 : vector<8x128xi1>, vector<8x128xf32>
    %c0_8 = arith.constant 0 : index
    %c0_9 = arith.constant 0 : index
    %20 = vector.load %arg6[%c0_8, %c0_9] : memref<8x128xf32, #tpu.memory_space<vmem>>, vector<8x128xf32>
    tpu.vector_store %arg6[%c0_8, %c0_9], %19 {strides = array<i32>} : memref<8x128xf32, #tpu.memory_space<vmem>>, vector<8x128xf32>,
    %21 = vector.shape_cast %19 : vector<8x128xf32> to vector<8x1x128xf32>
    %22 = tpu.iota {dimensions = array<i32: 2>} : vector<1x1x128xi32>
    %23 = tpu.iota {dimensions = array<i32: 1>} : vector<1x128x1xi32>
    %cst_10 = arith.constant 0.000000e+00 : f32
    %24 = vector.broadcast %cst_10 : f32 to vector<8x128xf32>
    %c0_i32 = arith.constant 0 : i32
    %c128_i32 = arith.constant 128 : i32
    %25 = arith.muli %c0_i32, %c128_i32 : i32
    %26 = tpu.assume_multiple %25, 128 : i32
    %c0_11 = arith.constant 0 : index
    %27 = arith.index_cast %26 : i32 to index
    %28 = vector.load %arg6[%c0_11, %27] : memref<8x128xf32, #tpu.memory_space<vmem>>, vector<8x128xf32>
    %29 = vector.shape_cast %28 : vector<8x128xf32> to vector<8x128x1xf32>
    %30 = vector.broadcast %26 : i32 to vector<1x128x1xi32>
    %31 = arith.addi %23, %30 : vector<1x128x1xi32>
    %32 = vector.broadcast %29 : vector<8x128x1xf32> to vector<8x128x128xf32>
    %33 = vector.broadcast %21 : vector<8x1x128xf32> to vector<8x128x128xf32>
    %34 = arith.cmpf ogt, %32, %33 : vector<8x128x128xf32>
    %35 = vector.broadcast %29 : vector<8x128x1xf32> to vector<8x128x128xf32>
    %36 = vector.broadcast %21 : vector<8x1x128xf32> to vector<8x128x128xf32>
    %37 = arith.cmpf oeq, %35, %36 : vector<8x128x128xf32>
    %38 = vector.broadcast %31 : vector<1x128x1xi32> to vector<1x128x128xi32>
    %39 = vector.broadcast %22 : vector<1x1x128xi32> to vector<1x128x128xi32>
    %40 = arith.cmpi slt, %38, %39 : vector<1x128x128xi32>
    %41 = vector.broadcast %40 : vector<1x128x128xi1> to vector<8x128x128xi1>
    %42 = arith.andi %37, %41 : vector<8x128x128xi1>
    %43 = arith.ori %34, %42 : vector<8x128x128xi1>
    %44 = arith.extui %43 : vector<8x128x128xi1> to vector<8x128x128xi32>
    %45 = arith.sitofp %44 : vector<8x128x128xi32> to vector<8x128x128xf32>
    %cst_12 = arith.constant dense<0.000000e+00> : vector<8x128xf32>
    %46 = vector.multi_reduction <add>, %45, %cst_12 [1] : vector<8x128x128xf32> to vector<8x128xf32>
    %47 = arith.addf %24, %46 : vector<8x128xf32>
    %c1_i32 = arith.constant 1 : i32
    %cst_13 = arith.constant 0.0290322583 : f32
    %48 = vector.broadcast %cst_13 : f32 to vector<8x128xf32>
    %49 = arith.mulf %48, %47 : vector<8x128xf32>
    %cst_14 = arith.constant 1.000000e+00 : f32
    %50 = vector.broadcast %cst_14 : f32 to vector<8x128xf32>
    %51 = arith.subf %50, %49 : vector<8x128xf32>
    %cst_15 = arith.constant 0.0568181835 : f32
    %52 = vector.broadcast %cst_15 : f32 to vector<8x128xf32>
    %53 = arith.mulf %51, %52 : vector<8x128xf32>
    %54 = arith.mulf %53, %11 : vector<8x128xf32>
    %55 = arith.mulf %54, %0 : vector<8x128xf32>
    %c0_16 = arith.constant 0 : index
    %c0_17 = arith.constant 0 : index
    %56 = vector.load %arg5[%c0_16, %c0_17] : memref<8x128xf32, #tpu.memory_space<vmem>>, vector<8x128xf32>
    tpu.vector_store %arg5[%c0_16, %c0_17], %55 {strides = array<i32>} : memref<8x128xf32, #tpu.memory_space<vmem>>, vector<8x128xf32>,
    return
  }
  func.func @transform_0(%arg0: i32) -> (i32, i32) {
    %c0_i32 = arith.constant 0 : i32
    %c0_i32_0 = arith.constant 0 : i32
    return %arg0, %c0_i32 : i32, i32
  }
  func.func @transform_1(%arg0: i32) -> (i32, i32) {
    %c0_i32 = arith.constant 0 : i32
    %c0_i32_0 = arith.constant 0 : i32
    %c0_i32_1 = arith.constant 0 : i32
    return %c0_i32, %c0_i32_0 : i32, i32
  }
  func.func @transform_2(%arg0: i32) -> (i32, i32) {
    %c0_i32 = arith.constant 0 : i32
    %c0_i32_0 = arith.constant 0 : i32
    %c0_i32_1 = arith.constant 0 : i32
    return %c0_i32, %c0_i32_0 : i32, i32
  }
  func.func @transform_3(%arg0: i32) -> (i32, i32) {
    %c0_i32 = arith.constant 0 : i32
    %c0_i32_0 = arith.constant 0 : i32
    return %arg0, %c0_i32 : i32, i32
  }
  func.func @transform_4(%arg0: i32) -> (i32, i32) {
    %c0_i32 = arith.constant 0 : i32
    %c0_i32_0 = arith.constant 0 : i32
    return %arg0, %c0_i32 : i32, i32
  }
}

</mosaic_0001>

<llo_original>
// kernel: tpu_custom_call.1
$region0: #{tpu_custom_call.1}
  #allocation0 [shape = 'u32[]', space=smem, size = 0x4, offset = 0x4, fixed_abs, tag = 'smem constant byte address 0x4 - core index']
  #allocation1 [shape = 'u32[144,128]{1,0:T(1,128)}', space=vmem, size = 0x12000, scoped, tag = 'internal scratch']
  #allocation2 [shape = 'f32[8,128]{1,0:T(8,128)}', space=vmem, size = 0x1000, scoped, tag = 'scratch operand']
  %s0 = inlined_call_operand.hbm [shape: f32[8,128], index: 0, kind: input, shape index: {}]
  %s1 = inlined_call_operand.vmem [shape: f32[1,128], index: 1, kind: input, shape index: {}]
  %s2 = inlined_call_operand.vmem [shape: f32[1,128], index: 2, kind: input, shape index: {}]
  %s3 = inlined_call_operand.hbm [shape: f32[8,128], index: 3, kind: output, shape index: {0}]
  %s4 = inlined_call_operand.hbm [shape: f32[8,128], index: 4, kind: output, shape index: {1}]
  %5 = xla_tuple %s3, %s4
  %s6 = sld [smem:[#allocation0]]
  $region34: #{tpu_custom_call.1} parent=0
    _
  %s8 = ssub.s32 1, %s6
  %s9 = scalar_select 0, %s8, %s6
  $region1: #{tpu_custom_call.1} parent=0
    #allocation3 [shape = 'u8[4096]{0}', space=vmem, size = 0x1000, scoped, tag = 'input window, operand 0, single buffered']
    #allocation4 [shape = 's32[1]{0}', space=sflag, size = 0x4, scoped, tag = 'scoped memory for tpu_custom_call.1']
    #allocation5 [shape = 's32[1]{0}', space=sflag, size = 0x4, scoped, tag = 'scoped memory for tpu_custom_call.1']
    #allocation6 [shape = 'u8[4096]{0}', space=vmem, size = 0x1000, scoped, tag = 'output window, operand 0, single buffered']
    #allocation7 [shape = 'u8[4096]{0}', space=vmem, size = 0x1000, scoped, tag = 'output window, operand 1, single buffered']
    #allocation8 [shape = 's32[1]{0}', space=sflag, size = 0x4, scoped, tag = 'scoped memory for tpu_custom_call.1']
    %10 = vsyncpa [#allocation4], 0
    %11 = vsyncpa [#allocation5], 0
    %12 = vsyncpa [#allocation8], 0
    // Predicated region
    $region2: #{tpu_custom_call.1} parent=1 // pred_check
      _
    $region3: #{tpu_custom_call.1} parent=1 // pred_check_branch
      %14 = sbr.rel (0) target = $region5
    $region4: #{tpu_custom_call.1} parent=1 // pred_region
      %s16 = ssub.s32 128, 128
      %17 = vsyncadd [#allocation4], %s16
      %s19 = sshll.u32 [#allocation3], 4
      %s20 = int_to_ptr.vmem [resolvable:$true] %s19
      %22 = dma.hbm_to_vmem [thread:$0]  %s0, 128, %s20, [#allocation4]
    $region5: #{tpu_custom_call.1} parent=1 // pred_fallthru
      _
    // Predicated region
    $region6: #{tpu_custom_call.1} parent=1 // pred_check
      _
    $region7: #{tpu_custom_call.1} parent=1 // pred_check_branch
      %24 = sbr.rel (0) target = $region9
    $region8: #{tpu_custom_call.1} parent=1 // pred_region
      _
    $region9: #{tpu_custom_call.1} parent=1 // pred_fallthru
      _
    // Predicated region
    $region10: #{tpu_custom_call.1} parent=1 // pred_check
      _
    $region11: #{tpu_custom_call.1} parent=1 // pred_check_branch
      %26 = sbr.rel (0) target = $region13
    $region12: #{tpu_custom_call.1} parent=1 // pred_region
      _
    $region13: #{tpu_custom_call.1} parent=1 // pred_fallthru
      _
    // Predicated region
    $region14: #{tpu_custom_call.1} parent=1 // pred_check
      _
    $region15: #{tpu_custom_call.1} parent=1 // pred_check_branch
      %28 = sbr.rel (0) target = $region17
    $region16: #{tpu_custom_call.1} parent=1 // pred_region
      %29 = dma.done [#allocation4], 128
    $region17: #{tpu_custom_call.1} parent=1 // pred_fallthru
      _
    %v30 = vld [vmem:[#allocation3] sm:$0xff]
    %v31 = vld [vmem:[%s2] sm:$0x1]
    %v32 = vld [vmem:[%s1] sm:$0x1]
    %v34 = vlaneseq
    %v35 = vshrl.u32 %v34, 7
    %v36 = vsub.s32 0, %v35
    %v37 = vrot.slane %v32, %v36
    %v39 = vsub.f32 %v30, %v37
    %v41 = vlaneseq
    %v42 = vshrl.u32 %v41, 7
    %v43 = vsub.s32 0, %v42
    %v44 = vrot.slane %v31, %v43
    %v46 = vmul.f32 %v44, %v39
    %v47 = vxor.u32 %v46, 2147483648
    %v48 = vmul.f32 %v47, 1.442695
    %v49 = vpow.pop %v48
    %v50 = vadd.f32 %v49, 1.0
    %v51 = vrcp.pop %v50
    %v52 = vmul.f32 1.0, %v51
    %53 = vst [vmem:[#allocation6] sm:$0xff] %v52
    %v54 = vlaneseq
    %v55 = vand.u32 %v54, 127
    %vm56 = vcmp.lt.s32.totalorder %v55, 32
    %v57 = vsel %vm56, 1, 0
    %vm58 = vcmp.eq.s32.totalorder %v57, 1
    %v59 = vsel %vm58, %v52, -1.0
    %60 = vst [vmem:[#allocation2] sm:$0xff] %v59
    %v62 = vcombine.high %v59, %v59
    %v64 = vunpack.c.l.s4 1966171168
    %v65 = vunpack.c.0.s8 %v64
    %v66 = vlaneseq
    %v67 = vshrl.u32 %v66, 7
    %v68 = vsub.s32 %v65, %v67
    %v69 = vrot.slane %v59, %v68
    %v71 = vunpack.c.l.s4 1966171168
    %v72 = vunpack.c.0.s8 %v71
    %v73 = vlaneseq
    %v74 = vshrl.u32 %v73, 7
    %v75 = vsub.s32 %v72, %v74
    %v76 = vrot.slane %v62, %v75
    %v77 = vcombine.high %v69, %v69
    %v78 = vcombine.high %v76, %v76
    %v80 = vunpack.c.l.s4 1966171168
    %v81 = vunpack.c.0.s8 %v80
    %v82 = vlaneseq
    %v83 = vshrl.u32 %v82, 7
    %v84 = vsub.s32 %v81, %v83
    %v85 = vrot.slane %v69, %v84
    %v87 = vunpack.c.l.s4 1966171168
    %v88 = vunpack.c.0.s8 %v87
    %v89 = vlaneseq
    %v90 = vshrl.u32 %v89, 7
    %v91 = vsub.s32 %v88, %v90
    %v92 = vrot.slane %v76, %v91
    %v94 = vunpack.c.l.s4 1966171168
    %v95 = vunpack.c.0.s8 %v94
    %v96 = vlaneseq
    %v97 = vshrl.u32 %v96, 7
    %v98 = vsub.s32 %v95, %v97
    %v99 = vrot.slane %v77, %v98
    %v101 = vunpack.c.l.s4 1966171168
    %v102 = vunpack.c.0.s8 %v101
    %v103 = vlaneseq
    %v104 = vshrl.u32 %v103, 7
    %v105 = vsub.s32 %v102, %v104
    %v106 = vrot.slane %v78, %v105
    %v107 = vcombine.high %v85, %v85
    %v108 = vcombine.high %v92, %v92
    %v109 = vcombine.high %v99, %v99
    %v110 = vcombine.high %v106, %v106
    %v111 = vlaneseq
    %v112 = vshrl.u32 %v111, 7
    %v113 = vadd.s32 %v112, 8
    %v114 = vadd.s32 %v112, 16
    %v115 = vadd.s32 %v112, 24
    %v116 = vadd.s32 %v112, 32
    %v117 = vadd.s32 %v112, 40
    %v118 = vadd.s32 %v112, 48
    %v119 = vadd.s32 %v112, 56
    %v120 = vadd.s32 %v112, 64
    %v121 = vadd.s32 %v112, 72
    %v122 = vadd.s32 %v112, 80
    %v123 = vadd.s32 %v112, 88
    %v124 = vadd.s32 %v112, 96
    %v125 = vadd.s32 %v112, 104
    %v126 = vadd.s32 %v112, 112
    %v127 = vadd.s32 %v112, 120
    %v128 = vld [vmem:[#allocation2] sm:$0xff]
    %v129 = vlaneseq
    %v130 = vshrl.u32 %v129, 7
    %v131 = vsub.s32 0, %v130
    %v132 = vrot.slane %v128, %v131
    %134 = vbcast.lane.b32.xlu0 %v132, 256
    %v135 = vpop.permute.xlu0 %134
    %s137 = sor.u32 256, 8
    %138 = vbcast.lane.b32.xlu0 %v132, %s137
    %v139 = vpop.permute.xlu0 %138
    %s141 = sor.u32 256, 16
    %142 = vbcast.lane.b32.xlu0 %v132, %s141
    %v143 = vpop.permute.xlu0 %142
    %s145 = sor.u32 256, 24
    %146 = vbcast.lane.b32.xlu0 %v132, %s145
    %v147 = vpop.permute.xlu0 %146
    %s149 = sor.u32 256, 32
    %150 = vbcast.lane.b32.xlu0 %v132, %s149
    %v151 = vpop.permute.xlu0 %150
    %s153 = sor.u32 256, 40
    %154 = vbcast.lane.b32.xlu0 %v132, %s153
    %v155 = vpop.permute.xlu0 %154
    %s157 = sor.u32 256, 48
    %158 = vbcast.lane.b32.xlu0 %v132, %s157
    %v159 = vpop.permute.xlu0 %158
    %s161 = sor.u32 256, 56
    %162 = vbcast.lane.b32.xlu0 %v132, %s161
    %v163 = vpop.permute.xlu0 %162
    %s165 = sor.u32 256, 64
    %166 = vbcast.lane.b32.xlu0 %v132, %s165
    %v167 = vpop.permute.xlu0 %166
    %s169 = sor.u32 256, 72
    %170 = vbcast.lane.b32.xlu0 %v132, %s169
    %v171 = vpop.permute.xlu0 %170
    %s173 = sor.u32 256, 80
    %174 = vbcast.lane.b32.xlu0 %v132, %s173
    %v175 = vpop.permute.xlu0 %174
    %s177 = sor.u32 256, 88
    %178 = vbcast.lane.b32.xlu0 %v132, %s177
    %v179 = vpop.permute.xlu0 %178
    %s181 = sor.u32 256, 96
    %182 = vbcast.lane.b32.xlu0 %v132, %s181
    %v183 = vpop.permute.xlu0 %182
    %s185 = sor.u32 256, 104
    %186 = vbcast.lane.b32.xlu0 %v132, %s185
    %v187 = vpop.permute.xlu0 %186
    %s189 = sor.u32 256, 112
    %190 = vbcast.lane.b32.xlu0 %v132, %s189
    %v191 = vpop.permute.xlu0 %190
    %s193 = sor.u32 256, 120
    %194 = vbcast.lane.b32.xlu0 %v132, %s193
    %v195 = vpop.permute.xlu0 %194
    %v196 = vlaneseq
    %v197 = vshrl.u32 %v196, 7
    %v198 = vsub.s32 1, %v197
    %v199 = vrot.slane %v128, %v198
    %201 = vbcast.lane.b32.xlu0 %v199, 256
    %v202 = vpop.permute.xlu0 %201
    %s204 = sor.u32 256, 8
    %205 = vbcast.lane.b32.xlu0 %v199, %s204
    %v206 = vpop.permute.xlu0 %205
    %s208 = sor.u32 256, 16
    %209 = vbcast.lane.b32.xlu0 %v199, %s208
    %v210 = vpop.permute.xlu0 %209
    %s212 = sor.u32 256, 24
    %213 = vbcast.lane.b32.xlu0 %v199, %s212
    %v214 = vpop.permute.xlu0 %213
    %s216 = sor.u32 256, 32
    %217 = vbcast.lane.b32.xlu0 %v199, %s216
    %v218 = vpop.permute.xlu0 %217
    %s220 = sor.u32 256, 40
    %221 = vbcast.lane.b32.xlu0 %v199, %s220
    %v222 = vpop.permute.xlu0 %221
    %s224 = sor.u32 256, 48
    %225 = vbcast.lane.b32.xlu0 %v199, %s224
    %v226 = vpop.permute.xlu0 %225
    %s228 = sor.u32 256, 56
    %229 = vbcast.lane.b32.xlu0 %v199, %s228
    %v230 = vpop.permute.xlu0 %229
    %s232 = sor.u32 256, 64
    %233 = vbcast.lane.b32.xlu0 %v199, %s232
    %v234 = vpop.permute.xlu0 %233
    %s236 = sor.u32 256, 72
    %237 = vbcast.lane.b32.xlu0 %v199, %s236
    %v238 = vpop.permute.xlu0 %237
    %s240 = sor.u32 256, 80
    %241 = vbcast.lane.b32.xlu0 %v199, %s240
    %v242 = vpop.permute.xlu0 %241
    %s244 = sor.u32 256, 88
    %245 = vbcast.lane.b32.xlu0 %v199, %s244
    %v246 = vpop.permute.xlu0 %245
    %s248 = sor.u32 256, 96
    %249 = vbcast.lane.b32.xlu0 %v199, %s248
    %v250 = vpop.permute.xlu0 %249
    %s252 = sor.u32 256, 104
    %253 = vbcast.lane.b32.xlu0 %v199, %s252
    %v254 = vpop.permute.xlu0 %253
    %s256 = sor.u32 256, 112
    %257 = vbcast.lane.b32.xlu0 %v199, %s256
    %v258 = vpop.permute.xlu0 %257
    %s260 = sor.u32 256, 120
    %261 = vbcast.lane.b32.xlu0 %v199, %s260
    %v262 = vpop.permute.xlu0 %261
    %v263 = vlaneseq
    %v264 = vshrl.u32 %v263, 7
    %v265 = vsub.s32 2, %v264
    %v266 = vrot.slane %v128, %v265
    %268 = vbcast.lane.b32.xlu0 %v266, 256
    %v269 = vpop.permute.xlu0 %268
    %s271 = sor.u32 256, 8
    %272 = vbcast.lane.b32.xlu0 %v266, %s271
    %v273 = vpop.permute.xlu0 %272
    %s275 = sor.u32 256, 16
    %276 = vbcast.lane.b32.xlu0 %v266, %s275
    %v277 = vpop.permute.xlu0 %276
    %s279 = sor.u32 256, 24
    %280 = vbcast.lane.b32.xlu0 %v266, %s279
    %v281 = vpop.permute.xlu0 %280
    %s283 = sor.u32 256, 32
    %284 = vbcast.lane.b32.xlu0 %v266, %s283
    %v285 = vpop.permute.xlu0 %284
    %s287 = sor.u32 256, 40
    %288 = vbcast.lane.b32.xlu0 %v266, %s287
    %v289 = vpop.permute.xlu0 %288
    %s291 = sor.u32 256, 48
    %292 = vbcast.lane.b32.xlu0 %v266, %s291
    %v293 = vpop.permute.xlu0 %292
    %s295 = sor.u32 256, 56
    %296 = vbcast.lane.b32.xlu0 %v266, %s295
    %v297 = vpop.permute.xlu0 %296
    %s299 = sor.u32 256, 64
    %300 = vbcast.lane.b32.xlu0 %v266, %s299
    %v301 = vpop.permute.xlu0 %300
    %s303 = sor.u32 256, 72
    %304 = vbcast.lane.b32.xlu0 %v266, %s303
    %v305 = vpop.permute.xlu0 %304
    %s307 = sor.u32 256, 80
    %308 = vbcast.lane.b32.xlu0 %v266, %s307
    %v309 = vpop.permute.xlu0 %308
    %s311 = sor.u32 256, 88
    %312 = vbcast.lane.b32.xlu0 %v266, %s311
    %v313 = vpop.permute.xlu0 %312
    %s315 = sor.u32 256, 96
    %316 = vbcast.lane.b32.xlu0 %v266, %s315
    %v317 = vpop.permute.xlu0 %316
    %s319 = sor.u32 256, 104
    %320 = vbcast.lane.b32.xlu0 %v266, %s319
    %v321 = vpop.permute.xlu0 %320
    %s323 = sor.u32 256, 112
    %324 = vbcast.lane.b32.xlu0 %v266, %s323
    %v325 = vpop.permute.xlu0 %324
    %s327 = sor.u32 256, 120
    %328 = vbcast.lane.b32.xlu0 %v266, %s327
    %v329 = vpop.permute.xlu0 %328
    %v330 = vlaneseq
    %v331 = vshrl.u32 %v330, 7
    %v332 = vsub.s32 3, %v331
    %v333 = vrot.slane %v128, %v332
    %335 = vbcast.lane.b32.xlu0 %v333, 256
    %v336 = vpop.permute.xlu0 %335
    %s338 = sor.u32 256, 8
    %339 = vbcast.lane.b32.xlu0 %v333, %s338
    %v340 = vpop.permute.xlu0 %339
    %s342 = sor.u32 256, 16
    %343 = vbcast.lane.b32.xlu0 %v333, %s342
    %v344 = vpop.permute.xlu0 %343
    %s346 = sor.u32 256, 24
    %347 = vbcast.lane.b32.xlu0 %v333, %s346
    %v348 = vpop.permute.xlu0 %347
    %s350 = sor.u32 256, 32
    %351 = vbcast.lane.b32.xlu0 %v333, %s350
    %v352 = vpop.permute.xlu0 %351
    %s354 = sor.u32 256, 40
    %355 = vbcast.lane.b32.xlu0 %v333, %s354
    %v356 = vpop.permute.xlu0 %355
    %s358 = sor.u32 256, 48
    %359 = vbcast.lane.b32.xlu0 %v333, %s358
    %v360 = vpop.permute.xlu0 %359
    %s362 = sor.u32 256, 56
    %363 = vbcast.lane.b32.xlu0 %v333, %s362
    %v364 = vpop.permute.xlu0 %363
    %s366 = sor.u32 256, 64
    %367 = vbcast.lane.b32.xlu0 %v333, %s366
    %v368 = vpop.permute.xlu0 %367
    %s370 = sor.u32 256, 72
    %371 = vbcast.lane.b32.xlu0 %v333, %s370
    %v372 = vpop.permute.xlu0 %371
    %s374 = sor.u32 256, 80
    %375 = vbcast.lane.b32.xlu0 %v333, %s374
    %v376 = vpop.permute.xlu0 %375
    %s378 = sor.u32 256, 88
    %379 = vbcast.lane.b32.xlu0 %v333, %s378
    %v380 = vpop.permute.xlu0 %379
    %s382 = sor.u32 256, 96
    %383 = vbcast.lane.b32.xlu0 %v333, %s382
    %v384 = vpop.permute.xlu0 %383
    %s386 = sor.u32 256, 104
    %387 = vbcast.lane.b32.xlu0 %v333, %s386
    %v388 = vpop.permute.xlu0 %387
    %s390 = sor.u32 256, 112
    %391 = vbcast.lane.b32.xlu0 %v333, %s390
    %v392 = vpop.permute.xlu0 %391
    %s394 = sor.u32 256, 120
    %395 = vbcast.lane.b32.xlu0 %v333, %s394
    %v396 = vpop.permute.xlu0 %395
    %v397 = vlaneseq
    %v398 = vshrl.u32 %v397, 7
    %v399 = vsub.s32 4, %v398
    %v400 = vrot.slane %v128, %v399
    %402 = vbcast.lane.b32.xlu0 %v400, 256
    %v403 = vpop.permute.xlu0 %402
    %s405 = sor.u32 256, 8
    %406 = vbcast.lane.b32.xlu0 %v400, %s405
    %v407 = vpop.permute.xlu0 %406
    %s409 = sor.u32 256, 16
    %410 = vbcast.lane.b32.xlu0 %v400, %s409
    %v411 = vpop.permute.xlu0 %410
    %s413 = sor.u32 256, 24
    %414 = vbcast.lane.b32.xlu0 %v400, %s413
    %v415 = vpop.permute.xlu0 %414
    %s417 = sor.u32 256, 32
    %418 = vbcast.lane.b32.xlu0 %v400, %s417
    %v419 = vpop.permute.xlu0 %418
    %s421 = sor.u32 256, 40
    %422 = vbcast.lane.b32.xlu0 %v400, %s421
    %v423 = vpop.permute.xlu0 %422
    %s425 = sor.u32 256, 48
    %426 = vbcast.lane.b32.xlu0 %v400, %s425
    %v427 = vpop.permute.xlu0 %426
    %s429 = sor.u32 256, 56
    %430 = vbcast.lane.b32.xlu0 %v400, %s429
    %v431 = vpop.permute.xlu0 %430
    %s433 = sor.u32 256, 64
    %434 = vbcast.lane.b32.xlu0 %v400, %s433
    %v435 = vpop.permute.xlu0 %434
    %s437 = sor.u32 256, 72
    %438 = vbcast.lane.b32.xlu0 %v400, %s437
    %v439 = vpop.permute.xlu0 %438
    %s441 = sor.u32 256, 80
    %442 = vbcast.lane.b32.xlu0 %v400, %s441
    %v443 = vpop.permute.xlu0 %442
    %s445 = sor.u32 256, 88
    %446 = vbcast.lane.b32.xlu0 %v400, %s445
    %v447 = vpop.permute.xlu0 %446
    %s449 = sor.u32 256, 96
    %450 = vbcast.lane.b32.xlu0 %v400, %s449
    %v451 = vpop.permute.xlu0 %450
    %s453 = sor.u32 256, 104
    %454 = vbcast.lane.b32.xlu0 %v400, %s453
    %v455 = vpop.permute.xlu0 %454
    %s457 = sor.u32 256, 112
    %458 = vbcast.lane.b32.xlu0 %v400, %s457
    %v459 = vpop.permute.xlu0 %458
    %s461 = sor.u32 256, 120
    %462 = vbcast.lane.b32.xlu0 %v400, %s461
    %v463 = vpop.permute.xlu0 %462
    %v464 = vlaneseq
    %v465 = vshrl.u32 %v464, 7
    %v466 = vsub.s32 5, %v465
    %v467 = vrot.slane %v128, %v466
    %469 = vbcast.lane.b32.xlu0 %v467, 256
    %v470 = vpop.permute.xlu0 %469
    %s472 = sor.u32 256, 8
    %473 = vbcast.lane.b32.xlu0 %v467, %s472
    %v474 = vpop.permute.xlu0 %473
    %s476 = sor.u32 256, 16
    %477 = vbcast.lane.b32.xlu0 %v467, %s476
    %v478 = vpop.permute.xlu0 %477
    %s480 = sor.u32 256, 24
    %481 = vbcast.lane.b32.xlu0 %v467, %s480
    %v482 = vpop.permute.xlu0 %481
    %s484 = sor.u32 256, 32
    %485 = vbcast.lane.b32.xlu0 %v467, %s484
    %v486 = vpop.permute.xlu0 %485
    %s488 = sor.u32 256, 40
    %489 = vbcast.lane.b32.xlu0 %v467, %s488
    %v490 = vpop.permute.xlu0 %489
    %s492 = sor.u32 256, 48
    %493 = vbcast.lane.b32.xlu0 %v467, %s492
    %v494 = vpop.permute.xlu0 %493
    %s496 = sor.u32 256, 56
    %497 = vbcast.lane.b32.xlu0 %v467, %s496
    %v498 = vpop.permute.xlu0 %497
    %s500 = sor.u32 256, 64
    %501 = vbcast.lane.b32.xlu0 %v467, %s500
    %v502 = vpop.permute.xlu0 %501
    %s504 = sor.u32 256, 72
    %505 = vbcast.lane.b32.xlu0 %v467, %s504
    %v506 = vpop.permute.xlu0 %505
    %s508 = sor.u32 256, 80
    %509 = vbcast.lane.b32.xlu0 %v467, %s508
    %v510 = vpop.permute.xlu0 %509
    %s512 = sor.u32 256, 88
    %513 = vbcast.lane.b32.xlu0 %v467, %s512
    %v514 = vpop.permute.xlu0 %513
    %s516 = sor.u32 256, 96
    %517 = vbcast.lane.b32.xlu0 %v467, %s516
    %v518 = vpop.permute.xlu0 %517
    %s520 = sor.u32 256, 104
    %521 = vbcast.lane.b32.xlu0 %v467, %s520
    %v522 = vpop.permute.xlu0 %521
    %s524 = sor.u32 256, 112
    %525 = vbcast.lane.b32.xlu0 %v467, %s524
    %v526 = vpop.permute.xlu0 %525
    %s528 = sor.u32 256, 120
    %529 = vbcast.lane.b32.xlu0 %v467, %s528
    %v530 = vpop.permute.xlu0 %529
    %v531 = vlaneseq
    %v532 = vshrl.u32 %v531, 7
    %v533 = vsub.s32 6, %v532
    %v534 = vrot.slane %v128, %v533
    %536 = vbcast.lane.b32.xlu0 %v534, 256
    %v537 = vpop.permute.xlu0 %536
    %s539 = sor.u32 256, 8
    %540 = vbcast.lane.b32.xlu0 %v534, %s539
    %v541 = vpop.permute.xlu0 %540
    %s543 = sor.u32 256, 16
    %544 = vbcast.lane.b32.xlu0 %v534, %s543
    %v545 = vpop.permute.xlu0 %544
    %s547 = sor.u32 256, 24
    %548 = vbcast.lane.b32.xlu0 %v534, %s547
    %v549 = vpop.permute.xlu0 %548
    %s551 = sor.u32 256, 32
    %552 = vbcast.lane.b32.xlu0 %v534, %s551
    %v553 = vpop.permute.xlu0 %552
    %s555 = sor.u32 256, 40
    %556 = vbcast.lane.b32.xlu0 %v534, %s555
    %v557 = vpop.permute.xlu0 %556
    %s559 = sor.u32 256, 48
    %560 = vbcast.lane.b32.xlu0 %v534, %s559
    %v561 = vpop.permute.xlu0 %560
    %s563 = sor.u32 256, 56
    %564 = vbcast.lane.b32.xlu0 %v534, %s563
    %v565 = vpop.permute.xlu0 %564
    %s567 = sor.u32 256, 64
    %568 = vbcast.lane.b32.xlu0 %v534, %s567
    %v569 = vpop.permute.xlu0 %568
    %s571 = sor.u32 256, 72
    %572 = vbcast.lane.b32.xlu0 %v534, %s571
    %v573 = vpop.permute.xlu0 %572
    %s575 = sor.u32 256, 80
    %576 = vbcast.lane.b32.xlu0 %v534, %s575
    %v577 = vpop.permute.xlu0 %576
    %s579 = sor.u32 256, 88
    %580 = vbcast.lane.b32.xlu0 %v534, %s579
    %v581 = vpop.permute.xlu0 %580
    %s583 = sor.u32 256, 96
    %584 = vbcast.lane.b32.xlu0 %v534, %s583
    %v585 = vpop.permute.xlu0 %584
    %s587 = sor.u32 256, 104
    %588 = vbcast.lane.b32.xlu0 %v534, %s587
    %v589 = vpop.permute.xlu0 %588
    %s591 = sor.u32 256, 112
    %592 = vbcast.lane.b32.xlu0 %v534, %s591
    %v593 = vpop.permute.xlu0 %592
    %s595 = sor.u32 256, 120
    %596 = vbcast.lane.b32.xlu0 %v534, %s595
    %v597 = vpop.permute.xlu0 %596
    %v598 = vlaneseq
    %v599 = vshrl.u32 %v598, 7
    %v600 = vsub.s32 7, %v599
    %v601 = vrot.slane %v128, %v600
    %603 = vbcast.lane.b32.xlu0 %v601, 256
    %v604 = vpop.permute.xlu0 %603
    %s606 = sor.u32 256, 8
    %607 = vbcast.lane.b32.xlu0 %v601, %s606
    %v608 = vpop.permute.xlu0 %607
    %s610 = sor.u32 256, 16
    %611 = vbcast.lane.b32.xlu0 %v601, %s610
    %v612 = vpop.permute.xlu0 %611
    %s614 = sor.u32 256, 24
    %615 = vbcast.lane.b32.xlu0 %v601, %s614
    %v616 = vpop.permute.xlu0 %615
    %s618 = sor.u32 256, 32
    %619 = vbcast.lane.b32.xlu0 %v601, %s618
    %v620 = vpop.permute.xlu0 %619
    %s622 = sor.u32 256, 40
    %623 = vbcast.lane.b32.xlu0 %v601, %s622
    %v624 = vpop.permute.xlu0 %623
    %s626 = sor.u32 256, 48
    %627 = vbcast.lane.b32.xlu0 %v601, %s626
    %v628 = vpop.permute.xlu0 %627
    %s630 = sor.u32 256, 56
    %631 = vbcast.lane.b32.xlu0 %v601, %s630
    %v632 = vpop.permute.xlu0 %631
    %s634 = sor.u32 256, 64
    %635 = vbcast.lane.b32.xlu0 %v601, %s634
    %v636 = vpop.permute.xlu0 %635
    %s638 = sor.u32 256, 72
    %639 = vbcast.lane.b32.xlu0 %v601, %s638
    %v640 = vpop.permute.xlu0 %639
    %s642 = sor.u32 256, 80
    %643 = vbcast.lane.b32.xlu0 %v601, %s642
    %v644 = vpop.permute.xlu0 %643
    %s646 = sor.u32 256, 88
    %647 = vbcast.lane.b32.xlu0 %v601, %s646
    %v648 = vpop.permute.xlu0 %647
    %s650 = sor.u32 256, 96
    %651 = vbcast.lane.b32.xlu0 %v601, %s650
    %v652 = vpop.permute.xlu0 %651
    %s654 = sor.u32 256, 104
    %655 = vbcast.lane.b32.xlu0 %v601, %s654
    %v656 = vpop.permute.xlu0 %655
    %s658 = sor.u32 256, 112
    %659 = vbcast.lane.b32.xlu0 %v601, %s658
    %v660 = vpop.permute.xlu0 %659
    %s662 = sor.u32 256, 120
    %663 = vbcast.lane.b32.xlu0 %v601, %s662
    %v664 = vpop.permute.xlu0 %663
    %v665 = vstv 0
    %v666 = vadd.s32 %v112, %v665
    %v667 = vadd.s32 %v113, %v665
    %v668 = vadd.s32 %v114, %v665
    %v669 = vadd.s32 %v115, %v665
    %v670 = vadd.s32 %v116, %v665
    %v671 = vadd.s32 %v117, %v665
    %v672 = vadd.s32 %v118, %v665
    %v673 = vadd.s32 %v119, %v665
    %v674 = vadd.s32 %v120, %v665
    %v675 = vadd.s32 %v121, %v665
    %v676 = vadd.s32 %v122, %v665
    %v677 = vadd.s32 %v123, %v665
    %v678 = vadd.s32 %v124, %v665
    %v679 = vadd.s32 %v125, %v665
    %v680 = vadd.s32 %v126, %v665
    %v681 = vadd.s32 %v127, %v665
    %v682 = vlaneseq
    %v683 = vshrl.u32 %v682, 7
    %v684 = vsub.s32 0, %v683
    %v685 = vrot.slane %v85, %v684
    %v686 = vlaneseq
    %v687 = vshrl.u32 %v686, 7
    %v688 = vsub.s32 0, %v687
    %v689 = vrot.slane %v99, %v688
    %v690 = vlaneseq
    %v691 = vshrl.u32 %v690, 7
    %v692 = vsub.s32 0, %v691
    %v693 = vrot.slane %v107, %v692
    %v694 = vlaneseq
    %v695 = vshrl.u32 %v694, 7
    %v696 = vsub.s32 0, %v695
    %v697 = vrot.slane %v109, %v696
    %v698 = vlaneseq
    %v699 = vshrl.u32 %v698, 7
    %v700 = vsub.s32 0, %v699
    %v701 = vrot.slane %v92, %v700
    %v702 = vlaneseq
    %v703 = vshrl.u32 %v702, 7
    %v704 = vsub.s32 0, %v703
    %v705 = vrot.slane %v106, %v704
    %v706 = vlaneseq
    %v707 = vshrl.u32 %v706, 7
    %v708 = vsub.s32 0, %v707
    %v709 = vrot.slane %v108, %v708
    %v710 = vlaneseq
    %v711 = vshrl.u32 %v710, 7
    %v712 = vsub.s32 0, %v711
    %v713 = vrot.slane %v110, %v712
    %vm722 = vcmp.gt.f32.partialorder %v135, %v685
    %vm723 = vcmp.gt.f32.partialorder %v139, %v685
    %vm724 = vcmp.gt.f32.partialorder %v143, %v685
    %vm725 = vcmp.gt.f32.partialorder %v147, %v685
    %vm726 = vcmp.gt.f32.partialorder %v151, %v685
    %vm727 = vcmp.gt.f32.partialorder %v155, %v685
    %vm728 = vcmp.gt.f32.partialorder %v159, %v685
    %vm729 = vcmp.gt.f32.partialorder %v163, %v685
    %vm730 = vcmp.gt.f32.partialorder %v167, %v685
    %vm731 = vcmp.gt.f32.partialorder %v171, %v685
    %vm732 = vcmp.gt.f32.partialorder %v175, %v685
    %vm733 = vcmp.gt.f32.partialorder %v179, %v685
    %vm734 = vcmp.gt.f32.partialorder %v183, %v685
    %vm735 = vcmp.gt.f32.partialorder %v187, %v685
    %vm736 = vcmp.gt.f32.partialorder %v191, %v685
    %vm737 = vcmp.gt.f32.partialorder %v195, %v685
    %vm738 = vcmp.gt.f32.partialorder %v202, %v689
    %vm739 = vcmp.gt.f32.partialorder %v206, %v689
    %vm740 = vcmp.gt.f32.partialorder %v210, %v689
    %vm741 = vcmp.gt.f32.partialorder %v214, %v689
    %vm742 = vcmp.gt.f32.partialorder %v218, %v689
    %vm743 = vcmp.gt.f32.partialorder %v222, %v689
    %vm744 = vcmp.gt.f32.partialorder %v226, %v689
    %vm745 = vcmp.gt.f32.partialorder %v230, %v689
    %vm746 = vcmp.gt.f32.partialorder %v234, %v689
    %vm747 = vcmp.gt.f32.partialorder %v238, %v689
    %vm748 = vcmp.gt.f32.partialorder %v242, %v689
    %vm749 = vcmp.gt.f32.partialorder %v246, %v689
    %vm750 = vcmp.gt.f32.partialorder %v250, %v689
    %vm751 = vcmp.gt.f32.partialorder %v254, %v689
    %vm752 = vcmp.gt.f32.partialorder %v258, %v689
    %vm753 = vcmp.gt.f32.partialorder %v262, %v689
    %vm754 = vcmp.gt.f32.partialorder %v269, %v693
    %vm755 = vcmp.gt.f32.partialorder %v273, %v693
    %vm756 = vcmp.gt.f32.partialorder %v277, %v693
    %vm757 = vcmp.gt.f32.partialorder %v281, %v693
    %vm758 = vcmp.gt.f32.partialorder %v285, %v693
    %vm759 = vcmp.gt.f32.partialorder %v289, %v693
    %vm760 = vcmp.gt.f32.partialorder %v293, %v693
    %vm761 = vcmp.gt.f32.partialorder %v297, %v693
    %vm762 = vcmp.gt.f32.partialorder %v301, %v693
    %vm763 = vcmp.gt.f32.partialorder %v305, %v693
    %vm764 = vcmp.gt.f32.partialorder %v309, %v693
    %vm765 = vcmp.gt.f32.partialorder %v313, %v693
    %vm766 = vcmp.gt.f32.partialorder %v317, %v693
    %vm767 = vcmp.gt.f32.partialorder %v321, %v693
    %vm768 = vcmp.gt.f32.partialorder %v325, %v693
    %vm769 = vcmp.gt.f32.partialorder %v329, %v693
    %vm770 = vcmp.gt.f32.partialorder %v336, %v697
    %vm771 = vcmp.gt.f32.partialorder %v340, %v697
    %vm772 = vcmp.gt.f32.partialorder %v344, %v697
    %vm773 = vcmp.gt.f32.partialorder %v348, %v697
    %vm774 = vcmp.gt.f32.partialorder %v352, %v697
    %vm775 = vcmp.gt.f32.partialorder %v356, %v697
    %vm776 = vcmp.gt.f32.partialorder %v360, %v697
    %vm777 = vcmp.gt.f32.partialorder %v364, %v697
    %vm778 = vcmp.gt.f32.partialorder %v368, %v697
    %vm779 = vcmp.gt.f32.partialorder %v372, %v697
    %vm780 = vcmp.gt.f32.partialorder %v376, %v697
    %vm781 = vcmp.gt.f32.partialorder %v380, %v697
    %vm782 = vcmp.gt.f32.partialorder %v384, %v697
    %vm783 = vcmp.gt.f32.partialorder %v388, %v697
    %vm784 = vcmp.gt.f32.partialorder %v392, %v697
    %vm785 = vcmp.gt.f32.partialorder %v396, %v697
    %vm786 = vcmp.gt.f32.partialorder %v403, %v701
    %vm787 = vcmp.gt.f32.partialorder %v407, %v701
    %vm788 = vcmp.gt.f32.partialorder %v411, %v701
    %vm789 = vcmp.gt.f32.partialorder %v415, %v701
    %vm790 = vcmp.gt.f32.partialorder %v419, %v701
    %vm791 = vcmp.gt.f32.partialorder %v423, %v701
    %vm792 = vcmp.gt.f32.partialorder %v427, %v701
    %vm793 = vcmp.gt.f32.partialorder %v431, %v701
    %vm794 = vcmp.gt.f32.partialorder %v435, %v701
    %vm795 = vcmp.gt.f32.partialorder %v439, %v701
    %vm796 = vcmp.gt.f32.partialorder %v443, %v701
    %vm797 = vcmp.gt.f32.partialorder %v447, %v701
    %vm798 = vcmp.gt.f32.partialorder %v451, %v701
    %vm799 = vcmp.gt.f32.partialorder %v455, %v701
    %vm800 = vcmp.gt.f32.partialorder %v459, %v701
    %vm801 = vcmp.gt.f32.partialorder %v463, %v701
    %vm802 = vcmp.gt.f32.partialorder %v470, %v705
    %vm803 = vcmp.gt.f32.partialorder %v474, %v705
    %vm804 = vcmp.gt.f32.partialorder %v478, %v705
    %vm805 = vcmp.gt.f32.partialorder %v482, %v705
    %vm806 = vcmp.gt.f32.partialorder %v486, %v705
    %vm807 = vcmp.gt.f32.partialorder %v490, %v705
    %vm808 = vcmp.gt.f32.partialorder %v494, %v705
    %vm809 = vcmp.gt.f32.partialorder %v498, %v705
    %vm810 = vcmp.gt.f32.partialorder %v502, %v705
    %vm811 = vcmp.gt.f32.partialorder %v506, %v705
    %vm812 = vcmp.gt.f32.partialorder %v510, %v705
    %vm813 = vcmp.gt.f32.partialorder %v514, %v705
    %vm814 = vcmp.gt.f32.partialorder %v518, %v705
    %vm815 = vcmp.gt.f32.partialorder %v522, %v705
    %vm816 = vcmp.gt.f32.partialorder %v526, %v705
    %vm817 = vcmp.gt.f32.partialorder %v530, %v705
    %vm818 = vcmp.gt.f32.partialorder %v537, %v709
    %vm819 = vcmp.gt.f32.partialorder %v541, %v709
    %vm820 = vcmp.gt.f32.partialorder %v545, %v709
    %vm821 = vcmp.gt.f32.partialorder %v549, %v709
    %vm822 = vcmp.gt.f32.partialorder %v553, %v709
    %vm823 = vcmp.gt.f32.partialorder %v557, %v709
    %vm824 = vcmp.gt.f32.partialorder %v561, %v709
    %vm825 = vcmp.gt.f32.partialorder %v565, %v709
    %vm826 = vcmp.gt.f32.partialorder %v569, %v709
    %vm827 = vcmp.gt.f32.partialorder %v573, %v709
    %vm828 = vcmp.gt.f32.partialorder %v577, %v709
    %vm829 = vcmp.gt.f32.partialorder %v581, %v709
    %vm830 = vcmp.gt.f32.partialorder %v585, %v709
    %vm831 = vcmp.gt.f32.partialorder %v589, %v709
    %vm832 = vcmp.gt.f32.partialorder %v593, %v709
    %vm833 = vcmp.gt.f32.partialorder %v597, %v709
    %vm834 = vcmp.gt.f32.partialorder %v604, %v713
    %vm835 = vcmp.gt.f32.partialorder %v608, %v713
    %vm836 = vcmp.gt.f32.partialorder %v612, %v713
    %vm837 = vcmp.gt.f32.partialorder %v616, %v713
    %vm838 = vcmp.gt.f32.partialorder %v620, %v713
    %vm839 = vcmp.gt.f32.partialorder %v624, %v713
    %vm840 = vcmp.gt.f32.partialorder %v628, %v713
    %vm841 = vcmp.gt.f32.partialorder %v632, %v713
    %vm842 = vcmp.gt.f32.partialorder %v636, %v713
    %vm843 = vcmp.gt.f32.partialorder %v640, %v713
    %vm844 = vcmp.gt.f32.partialorder %v644, %v713
    %vm845 = vcmp.gt.f32.partialorder %v648, %v713
    %vm846 = vcmp.gt.f32.partialorder %v652, %v713
    %vm847 = vcmp.gt.f32.partialorder %v656, %v713
    %vm848 = vcmp.gt.f32.partialorder %v660, %v713
    %vm849 = vcmp.gt.f32.partialorder %v664, %v713
    %vm850 = vcmp.eq.f32.partialorder %v135, %v685
    %vm851 = vcmp.eq.f32.partialorder %v139, %v685
    %vm852 = vcmp.eq.f32.partialorder %v143, %v685
    %vm853 = vcmp.eq.f32.partialorder %v147, %v685
    %vm854 = vcmp.eq.f32.partialorder %v151, %v685
    %vm855 = vcmp.eq.f32.partialorder %v155, %v685
    %vm856 = vcmp.eq.f32.partialorder %v159, %v685
    %vm857 = vcmp.eq.f32.partialorder %v163, %v685
    %vm858 = vcmp.eq.f32.partialorder %v167, %v685
    %vm859 = vcmp.eq.f32.partialorder %v171, %v685
    %vm860 = vcmp.eq.f32.partialorder %v175, %v685
    %vm861 = vcmp.eq.f32.partialorder %v179, %v685
    %vm862 = vcmp.eq.f32.partialorder %v183, %v685
    %vm863 = vcmp.eq.f32.partialorder %v187, %v685
    %vm864 = vcmp.eq.f32.partialorder %v191, %v685
    %vm865 = vcmp.eq.f32.partialorder %v195, %v685
    %vm866 = vcmp.eq.f32.partialorder %v202, %v689
    %vm867 = vcmp.eq.f32.partialorder %v206, %v689
    %vm868 = vcmp.eq.f32.partialorder %v210, %v689
    %vm869 = vcmp.eq.f32.partialorder %v214, %v689
    %vm870 = vcmp.eq.f32.partialorder %v218, %v689
    %vm871 = vcmp.eq.f32.partialorder %v222, %v689
    %vm872 = vcmp.eq.f32.partialorder %v226, %v689
    %vm873 = vcmp.eq.f32.partialorder %v230, %v689
    %vm874 = vcmp.eq.f32.partialorder %v234, %v689
    %vm875 = vcmp.eq.f32.partialorder %v238, %v689
    %vm876 = vcmp.eq.f32.partialorder %v242, %v689
    %vm877 = vcmp.eq.f32.partialorder %v246, %v689
    %vm878 = vcmp.eq.f32.partialorder %v250, %v689
    %vm879 = vcmp.eq.f32.partialorder %v254, %v689
    %vm880 = vcmp.eq.f32.partialorder %v258, %v689
    %vm881 = vcmp.eq.f32.partialorder %v262, %v689
    %vm882 = vcmp.eq.f32.partialorder %v269, %v693
    %vm883 = vcmp.eq.f32.partialorder %v273, %v693
    %vm884 = vcmp.eq.f32.partialorder %v277, %v693
    %vm885 = vcmp.eq.f32.partialorder %v281, %v693
    %vm886 = vcmp.eq.f32.partialorder %v285, %v693
    %vm887 = vcmp.eq.f32.partialorder %v289, %v693
    %vm888 = vcmp.eq.f32.partialorder %v293, %v693
    %vm889 = vcmp.eq.f32.partialorder %v297, %v693
    %vm890 = vcmp.eq.f32.partialorder %v301, %v693
    %vm891 = vcmp.eq.f32.partialorder %v305, %v693
    %vm892 = vcmp.eq.f32.partialorder %v309, %v693
    %vm893 = vcmp.eq.f32.partialorder %v313, %v693
    %vm894 = vcmp.eq.f32.partialorder %v317, %v693
    %vm895 = vcmp.eq.f32.partialorder %v321, %v693
    %vm896 = vcmp.eq.f32.partialorder %v325, %v693
    %vm897 = vcmp.eq.f32.partialorder %v329, %v693
    %vm898 = vcmp.eq.f32.partialorder %v336, %v697
    %vm899 = vcmp.eq.f32.partialorder %v340, %v697
    %vm900 = vcmp.eq.f32.partialorder %v344, %v697
    %vm901 = vcmp.eq.f32.partialorder %v348, %v697
    %vm902 = vcmp.eq.f32.partialorder %v352, %v697
    %vm903 = vcmp.eq.f32.partialorder %v356, %v697
    %vm904 = vcmp.eq.f32.partialorder %v360, %v697
    %vm905 = vcmp.eq.f32.partialorder %v364, %v697
    %vm906 = vcmp.eq.f32.partialorder %v368, %v697
    %vm907 = vcmp.eq.f32.partialorder %v372, %v697
    %vm908 = vcmp.eq.f32.partialorder %v376, %v697
    %vm909 = vcmp.eq.f32.partialorder %v380, %v697
    %vm910 = vcmp.eq.f32.partialorder %v384, %v697
    %vm911 = vcmp.eq.f32.partialorder %v388, %v697
    %vm912 = vcmp.eq.f32.partialorder %v392, %v697
    %vm913 = vcmp.eq.f32.partialorder %v396, %v697
    %vm914 = vcmp.eq.f32.partialorder %v403, %v701
    %vm915 = vcmp.eq.f32.partialorder %v407, %v701
    %vm916 = vcmp.eq.f32.partialorder %v411, %v701
    %vm917 = vcmp.eq.f32.partialorder %v415, %v701
    %vm918 = vcmp.eq.f32.partialorder %v419, %v701
    %vm919 = vcmp.eq.f32.partialorder %v423, %v701
    %vm920 = vcmp.eq.f32.partialorder %v427, %v701
    %vm921 = vcmp.eq.f32.partialorder %v431, %v701
    %vm922 = vcmp.eq.f32.partialorder %v435, %v701
    %vm923 = vcmp.eq.f32.partialorder %v439, %v701
    %vm924 = vcmp.eq.f32.partialorder %v443, %v701
    %vm925 = vcmp.eq.f32.partialorder %v447, %v701
    %vm926 = vcmp.eq.f32.partialorder %v451, %v701
    %vm927 = vcmp.eq.f32.partialorder %v455, %v701
    %vm928 = vcmp.eq.f32.partialorder %v459, %v701
    %vm929 = vcmp.eq.f32.partialorder %v463, %v701
    %vm930 = vcmp.eq.f32.partialorder %v470, %v705
    %vm931 = vcmp.eq.f32.partialorder %v474, %v705
    %vm932 = vcmp.eq.f32.partialorder %v478, %v705
    %vm933 = vcmp.eq.f32.partialorder %v482, %v705
    %vm934 = vcmp.eq.f32.partialorder %v486, %v705
    %vm935 = vcmp.eq.f32.partialorder %v490, %v705
    %vm936 = vcmp.eq.f32.partialorder %v494, %v705
    %vm937 = vcmp.eq.f32.partialorder %v498, %v705
    %vm938 = vcmp.eq.f32.partialorder %v502, %v705
    %vm939 = vcmp.eq.f32.partialorder %v506, %v705
    %vm940 = vcmp.eq.f32.partialorder %v510, %v705
    %vm941 = vcmp.eq.f32.partialorder %v514, %v705
    %vm942 = vcmp.eq.f32.partialorder %v518, %v705
    %vm943 = vcmp.eq.f32.partialorder %v522, %v705
    %vm944 = vcmp.eq.f32.partialorder %v526, %v705
    %vm945 = vcmp.eq.f32.partialorder %v530, %v705
    %vm946 = vcmp.eq.f32.partialorder %v537, %v709
    %vm947 = vcmp.eq.f32.partialorder %v541, %v709
    %vm948 = vcmp.eq.f32.partialorder %v545, %v709
    %vm949 = vcmp.eq.f32.partialorder %v549, %v709
    %vm950 = vcmp.eq.f32.partialorder %v553, %v709
    %vm951 = vcmp.eq.f32.partialorder %v557, %v709
    %vm952 = vcmp.eq.f32.partialorder %v561, %v709
    %vm953 = vcmp.eq.f32.partialorder %v565, %v709
    %vm954 = vcmp.eq.f32.partialorder %v569, %v709
    %vm955 = vcmp.eq.f32.partialorder %v573, %v709
    %vm956 = vcmp.eq.f32.partialorder %v577, %v709
    %vm957 = vcmp.eq.f32.partialorder %v581, %v709
    %vm958 = vcmp.eq.f32.partialorder %v585, %v709
    %vm959 = vcmp.eq.f32.partialorder %v589, %v709
    %vm960 = vcmp.eq.f32.partialorder %v593, %v709
    %vm961 = vcmp.eq.f32.partialorder %v597, %v709
    %vm962 = vcmp.eq.f32.partialorder %v604, %v713
    %vm963 = vcmp.eq.f32.partialorder %v608, %v713
    %vm964 = vcmp.eq.f32.partialorder %v612, %v713
    %vm965 = vcmp.eq.f32.partialorder %v616, %v713
    %vm966 = vcmp.eq.f32.partialorder %v620, %v713
    %vm967 = vcmp.eq.f32.partialorder %v624, %v713
    %vm968 = vcmp.eq.f32.partialorder %v628, %v713
    %vm969 = vcmp.eq.f32.partialorder %v632, %v713
    %vm970 = vcmp.eq.f32.partialorder %v636, %v713
    %vm971 = vcmp.eq.f32.partialorder %v640, %v713
    %vm972 = vcmp.eq.f32.partialorder %v644, %v713
    %vm973 = vcmp.eq.f32.partialorder %v648, %v713
    %vm974 = vcmp.eq.f32.partialorder %v652, %v713
    %vm975 = vcmp.eq.f32.partialorder %v656, %v713
    %vm976 = vcmp.eq.f32.partialorder %v660, %v713
    %vm977 = vcmp.eq.f32.partialorder %v664, %v713
    %vm978 = vcmp.lt.s32.totalorder %v666, %v55
    %vm979 = vcmp.lt.s32.totalorder %v667, %v55
    %vm980 = vcmp.lt.s32.totalorder %v668, %v55
    %vm981 = vcmp.lt.s32.totalorder %v669, %v55
    %vm982 = vcmp.lt.s32.totalorder %v670, %v55
    %vm983 = vcmp.lt.s32.totalorder %v671, %v55
    %vm984 = vcmp.lt.s32.totalorder %v672, %v55
    %vm985 = vcmp.lt.s32.totalorder %v673, %v55
    %vm986 = vcmp.lt.s32.totalorder %v674, %v55
    %vm987 = vcmp.lt.s32.totalorder %v675, %v55
    %vm988 = vcmp.lt.s32.totalorder %v676, %v55
    %vm989 = vcmp.lt.s32.totalorder %v677, %v55
    %vm990 = vcmp.lt.s32.totalorder %v678, %v55
    %vm991 = vcmp.lt.s32.totalorder %v679, %v55
    %vm992 = vcmp.lt.s32.totalorder %v680, %v55
    %vm993 = vcmp.lt.s32.totalorder %v681, %v55
    %v994 = vsel %vm978, 1, 0
    %v995 = vsel %vm979, 1, 0
    %v996 = vsel %vm980, 1, 0
    %v997 = vsel %vm981, 1, 0
    %v998 = vsel %vm982, 1, 0
    %v999 = vsel %vm983, 1, 0
    %v1000 = vsel %vm984, 1, 0
    %v1001 = vsel %vm985, 1, 0
    %v1002 = vsel %vm986, 1, 0
    %v1003 = vsel %vm987, 1, 0
    %v1004 = vsel %vm988, 1, 0
    %v1005 = vsel %vm989, 1, 0
    %v1006 = vsel %vm990, 1, 0
    %v1007 = vsel %vm991, 1, 0
    %v1008 = vsel %vm992, 1, 0
    %v1009 = vsel %vm993, 1, 0
    %vm1010 = vcmp.eq.s32.totalorder %v994, 1
    %vm1011 = vcmp.eq.s32.totalorder %v995, 1
    %vm1012 = vcmp.eq.s32.totalorder %v996, 1
    %vm1013 = vcmp.eq.s32.totalorder %v997, 1
    %vm1014 = vcmp.eq.s32.totalorder %v998, 1
    %vm1015 = vcmp.eq.s32.totalorder %v999, 1
    %vm1016 = vcmp.eq.s32.totalorder %v1000, 1
    %vm1017 = vcmp.eq.s32.totalorder %v1001, 1
    %vm1018 = vcmp.eq.s32.totalorder %v1002, 1
    %vm1019 = vcmp.eq.s32.totalorder %v1003, 1
    %vm1020 = vcmp.eq.s32.totalorder %v1004, 1
    %vm1021 = vcmp.eq.s32.totalorder %v1005, 1
    %vm1022 = vcmp.eq.s32.totalorder %v1006, 1
    %vm1023 = vcmp.eq.s32.totalorder %v1007, 1
    %vm1024 = vcmp.eq.s32.totalorder %v1008, 1
    %vm1025 = vcmp.eq.s32.totalorder %v1009, 1
    %vm1026 = vmand %vm850, %vm1010
    %vm1027 = vmand %vm851, %vm1011
    %vm1028 = vmand %vm852, %vm1012
    %vm1029 = vmand %vm853, %vm1013
    %vm1030 = vmand %vm854, %vm1014
    %vm1031 = vmand %vm855, %vm1015
    %vm1032 = vmand %vm856, %vm1016
    %vm1033 = vmand %vm857, %vm1017
    %vm1034 = vmand %vm858, %vm1018
    %vm1035 = vmand %vm859, %vm1019
    %vm1036 = vmand %vm860, %vm1020
    %vm1037 = vmand %vm861, %vm1021
    %vm1038 = vmand %vm862, %vm1022
    %vm1039 = vmand %vm863, %vm1023
    %vm1040 = vmand %vm864, %vm1024
    %vm1041 = vmand %vm865, %vm1025
    %vm1042 = vmand %vm866, %vm1010
    %vm1043 = vmand %vm867, %vm1011
    %vm1044 = vmand %vm868, %vm1012
    %vm1045 = vmand %vm869, %vm1013
    %vm1046 = vmand %vm870, %vm1014
    %vm1047 = vmand %vm871, %vm1015
    %vm1048 = vmand %vm872, %vm1016
    %vm1049 = vmand %vm873, %vm1017
    %vm1050 = vmand %vm874, %vm1018
    %vm1051 = vmand %vm875, %vm1019
    %vm1052 = vmand %vm876, %vm1020
    %vm1053 = vmand %vm877, %vm1021
    %vm1054 = vmand %vm878, %vm1022
    %vm1055 = vmand %vm879, %vm1023
    %vm1056 = vmand %vm880, %vm1024
    %vm1057 = vmand %vm881, %vm1025
    %vm1058 = vmand %vm882, %vm1010
    %vm1059 = vmand %vm883, %vm1011
    %vm1060 = vmand %vm884, %vm1012
    %vm1061 = vmand %vm885, %vm1013
    %vm1062 = vmand %vm886, %vm1014
    %vm1063 = vmand %vm887, %vm1015
    %vm1064 = vmand %vm888, %vm1016
    %vm1065 = vmand %vm889, %vm1017
    %vm1066 = vmand %vm890, %vm1018
    %vm1067 = vmand %vm891, %vm1019
    %vm1068 = vmand %vm892, %vm1020
    %vm1069 = vmand %vm893, %vm1021
    %vm1070 = vmand %vm894, %vm1022
    %vm1071 = vmand %vm895, %vm1023
    %vm1072 = vmand %vm896, %vm1024
    %vm1073 = vmand %vm897, %vm1025
    %vm1074 = vmand %vm898, %vm1010
    %vm1075 = vmand %vm899, %vm1011
    %vm1076 = vmand %vm900, %vm1012
    %vm1077 = vmand %vm901, %vm1013
    %vm1078 = vmand %vm902, %vm1014
    %vm1079 = vmand %vm903, %vm1015
    %vm1080 = vmand %vm904, %vm1016
    %vm1081 = vmand %vm905, %vm1017
    %vm1082 = vmand %vm906, %vm1018
    %vm1083 = vmand %vm907, %vm1019
    %vm1084 = vmand %vm908, %vm1020
    %vm1085 = vmand %vm909, %vm1021
    %vm1086 = vmand %vm910, %vm1022
    %vm1087 = vmand %vm911, %vm1023
    %vm1088 = vmand %vm912, %vm1024
    %vm1089 = vmand %vm913, %vm1025
    %vm1090 = vmand %vm914, %vm1010
    %vm1091 = vmand %vm915, %vm1011
    %vm1092 = vmand %vm916, %vm1012
    %vm1093 = vmand %vm917, %vm1013
    %vm1094 = vmand %vm918, %vm1014
    %vm1095 = vmand %vm919, %vm1015
    %vm1096 = vmand %vm920, %vm1016
    %vm1097 = vmand %vm921, %vm1017
    %vm1098 = vmand %vm922, %vm1018
    %vm1099 = vmand %vm923, %vm1019
    %vm1100 = vmand %vm924, %vm1020
    %vm1101 = vmand %vm925, %vm1021
    %vm1102 = vmand %vm926, %vm1022
    %vm1103 = vmand %vm927, %vm1023
    %vm1104 = vmand %vm928, %vm1024
    %vm1105 = vmand %vm929, %vm1025
    %vm1106 = vmand %vm930, %vm1010
    %vm1107 = vmand %vm931, %vm1011
    %vm1108 = vmand %vm932, %vm1012
    %vm1109 = vmand %vm933, %vm1013
    %vm1110 = vmand %vm934, %vm1014
    %vm1111 = vmand %vm935, %vm1015
    %vm1112 = vmand %vm936, %vm1016
    %vm1113 = vmand %vm937, %vm1017
    %vm1114 = vmand %vm938, %vm1018
    %vm1115 = vmand %vm939, %vm1019
    %vm1116 = vmand %vm940, %vm1020
    %vm1117 = vmand %vm941, %vm1021
    %vm1118 = vmand %vm942, %vm1022
    %vm1119 = vmand %vm943, %vm1023
    %vm1120 = vmand %vm944, %vm1024
    %vm1121 = vmand %vm945, %vm1025
    %vm1122 = vmand %vm946, %vm1010
    %vm1123 = vmand %vm947, %vm1011
    %vm1124 = vmand %vm948, %vm1012
    %vm1125 = vmand %vm949, %vm1013
    %vm1126 = vmand %vm950, %vm1014
    %vm1127 = vmand %vm951, %vm1015
    %vm1128 = vmand %vm952, %vm1016
    %vm1129 = vmand %vm953, %vm1017
    %vm1130 = vmand %vm954, %vm1018
    %vm1131 = vmand %vm955, %vm1019
    %vm1132 = vmand %vm956, %vm1020
    %vm1133 = vmand %vm957, %vm1021
    %vm1134 = vmand %vm958, %vm1022
    %vm1135 = vmand %vm959, %vm1023
    %vm1136 = vmand %vm960, %vm1024
    %vm1137 = vmand %vm961, %vm1025
    %vm1138 = vmand %vm962, %vm1010
    %vm1139 = vmand %vm963, %vm1011
    %vm1140 = vmand %vm964, %vm1012
    %vm1141 = vmand %vm965, %vm1013
    %vm1142 = vmand %vm966, %vm1014
    %vm1143 = vmand %vm967, %vm1015
    %vm1144 = vmand %vm968, %vm1016
    %vm1145 = vmand %vm969, %vm1017
    %vm1146 = vmand %vm970, %vm1018
    %vm1147 = vmand %vm971, %vm1019
    %vm1148 = vmand %vm972, %vm1020
    %vm1149 = vmand %vm973, %vm1021
    %vm1150 = vmand %vm974, %vm1022
    %vm1151 = vmand %vm975, %vm1023
    %vm1152 = vmand %vm976, %vm1024
    %vm1153 = vmand %vm977, %vm1025
    %vm1154 = vmor %vm722, %vm1026
    %vm1155 = vmor %vm723, %vm1027
    %vm1156 = vmor %vm724, %vm1028
    %vm1157 = vmor %vm725, %vm1029
    %vm1158 = vmor %vm726, %vm1030
    %vm1159 = vmor %vm727, %vm1031
    %vm1160 = vmor %vm728, %vm1032
    %vm1161 = vmor %vm729, %vm1033
    %vm1162 = vmor %vm730, %vm1034
    %vm1163 = vmor %vm731, %vm1035
    %vm1164 = vmor %vm732, %vm1036
    %vm1165 = vmor %vm733, %vm1037
    %vm1166 = vmor %vm734, %vm1038
    %vm1167 = vmor %vm735, %vm1039
    %vm1168 = vmor %vm736, %vm1040
    %vm1169 = vmor %vm737, %vm1041
    %vm1170 = vmor %vm738, %vm1042
    %vm1171 = vmor %vm739, %vm1043
    %vm1172 = vmor %vm740, %vm1044
    %vm1173 = vmor %vm741, %vm1045
    %vm1174 = vmor %vm742, %vm1046
    %vm1175 = vmor %vm743, %vm1047
    %vm1176 = vmor %vm744, %vm1048
    %vm1177 = vmor %vm745, %vm1049
    %vm1178 = vmor %vm746, %vm1050
    %vm1179 = vmor %vm747, %vm1051
    %vm1180 = vmor %vm748, %vm1052
    %vm1181 = vmor %vm749, %vm1053
    %vm1182 = vmor %vm750, %vm1054
    %vm1183 = vmor %vm751, %vm1055
    %vm1184 = vmor %vm752, %vm1056
    %vm1185 = vmor %vm753, %vm1057
    %vm1186 = vmor %vm754, %vm1058
    %vm1187 = vmor %vm755, %vm1059
    %vm1188 = vmor %vm756, %vm1060
    %vm1189 = vmor %vm757, %vm1061
    %vm1190 = vmor %vm758, %vm1062
    %vm1191 = vmor %vm759, %vm1063
    %vm1192 = vmor %vm760, %vm1064
    %vm1193 = vmor %vm761, %vm1065
    %vm1194 = vmor %vm762, %vm1066
    %vm1195 = vmor %vm763, %vm1067
    %vm1196 = vmor %vm764, %vm1068
    %vm1197 = vmor %vm765, %vm1069
    %vm1198 = vmor %vm766, %vm1070
    %vm1199 = vmor %vm767, %vm1071
    %vm1200 = vmor %vm768, %vm1072
    %vm1201 = vmor %vm769, %vm1073
    %vm1202 = vmor %vm770, %vm1074
    %vm1203 = vmor %vm771, %vm1075
    %vm1204 = vmor %vm772, %vm1076
    %vm1205 = vmor %vm773, %vm1077
    %vm1206 = vmor %vm774, %vm1078
    %vm1207 = vmor %vm775, %vm1079
    %vm1208 = vmor %vm776, %vm1080
    %vm1209 = vmor %vm777, %vm1081
    %vm1210 = vmor %vm778, %vm1082
    %vm1211 = vmor %vm779, %vm1083
    %vm1212 = vmor %vm780, %vm1084
    %vm1213 = vmor %vm781, %vm1085
    %vm1214 = vmor %vm782, %vm1086
    %vm1215 = vmor %vm783, %vm1087
    %vm1216 = vmor %vm784, %vm1088
    %vm1217 = vmor %vm785, %vm1089
    %vm1218 = vmor %vm786, %vm1090
    %vm1219 = vmor %vm787, %vm1091
    %vm1220 = vmor %vm788, %vm1092
    %vm1221 = vmor %vm789, %vm1093
    %vm1222 = vmor %vm790, %vm1094
    %vm1223 = vmor %vm791, %vm1095
    %vm1224 = vmor %vm792, %vm1096
    %vm1225 = vmor %vm793, %vm1097
    %vm1226 = vmor %vm794, %vm1098
    %vm1227 = vmor %vm795, %vm1099
    %vm1228 = vmor %vm796, %vm1100
    %vm1229 = vmor %vm797, %vm1101
    %vm1230 = vmor %vm798, %vm1102
    %vm1231 = vmor %vm799, %vm1103
    %vm1232 = vmor %vm800, %vm1104
    %vm1233 = vmor %vm801, %vm1105
    %vm1234 = vmor %vm802, %vm1106
    %vm1235 = vmor %vm803, %vm1107
    %vm1236 = vmor %vm804, %vm1108
    %vm1237 = vmor %vm805, %vm1109
    %vm1238 = vmor %vm806, %vm1110
    %vm1239 = vmor %vm807, %vm1111
    %vm1240 = vmor %vm808, %vm1112
    %vm1241 = vmor %vm809, %vm1113
    %vm1242 = vmor %vm810, %vm1114
    %vm1243 = vmor %vm811, %vm1115
    %vm1244 = vmor %vm812, %vm1116
    %vm1245 = vmor %vm813, %vm1117
    %vm1246 = vmor %vm814, %vm1118
    %vm1247 = vmor %vm815, %vm1119
    %vm1248 = vmor %vm816, %vm1120
    %vm1249 = vmor %vm817, %vm1121
    %vm1250 = vmor %vm818, %vm1122
    %vm1251 = vmor %vm819, %vm1123
    %vm1252 = vmor %vm820, %vm1124
    %vm1253 = vmor %vm821, %vm1125
    %vm1254 = vmor %vm822, %vm1126
    %vm1255 = vmor %vm823, %vm1127
    %vm1256 = vmor %vm824, %vm1128
    %vm1257 = vmor %vm825, %vm1129
    %vm1258 = vmor %vm826, %vm1130
    %vm1259 = vmor %vm827, %vm1131
    %vm1260 = vmor %vm828, %vm1132
    %vm1261 = vmor %vm829, %vm1133
    %vm1262 = vmor %vm830, %vm1134
    %vm1263 = vmor %vm831, %vm1135
    %vm1264 = vmor %vm832, %vm1136
    %vm1265 = vmor %vm833, %vm1137
    %vm1266 = vmor %vm834, %vm1138
    %vm1267 = vmor %vm835, %vm1139
    %vm1268 = vmor %vm836, %vm1140
    %vm1269 = vmor %vm837, %vm1141
    %vm1270 = vmor %vm838, %vm1142
    %vm1271 = vmor %vm839, %vm1143
    %vm1272 = vmor %vm840, %vm1144
    %vm1273 = vmor %vm841, %vm1145
    %vm1274 = vmor %vm842, %vm1146
    %vm1275 = vmor %vm843, %vm1147
    %vm1276 = vmor %vm844, %vm1148
    %vm1277 = vmor %vm845, %vm1149
    %vm1278 = vmor %vm846, %vm1150
    %vm1279 = vmor %vm847, %vm1151
    %vm1280 = vmor %vm848, %vm1152
    %vm1281 = vmor %vm849, %vm1153
    %v1282 = vsel %vm1154, 1, 0
    %v1283 = vsel %vm1155, 1, 0
    %v1284 = vsel %vm1156, 1, 0
    %v1285 = vsel %vm1157, 1, 0
    %v1286 = vsel %vm1158, 1, 0
    %v1287 = vsel %vm1159, 1, 0
    %v1288 = vsel %vm1160, 1, 0
    %v1289 = vsel %vm1161, 1, 0
    %v1290 = vsel %vm1162, 1, 0
    %v1291 = vsel %vm1163, 1, 0
    %v1292 = vsel %vm1164, 1, 0
    %v1293 = vsel %vm1165, 1, 0
    %v1294 = vsel %vm1166, 1, 0
    %v1295 = vsel %vm1167, 1, 0
    %v1296 = vsel %vm1168, 1, 0
    %v1297 = vsel %vm1169, 1, 0
    %v1298 = vsel %vm1170, 1, 0
    %v1299 = vsel %vm1171, 1, 0
    %v1300 = vsel %vm1172, 1, 0
    %v1301 = vsel %vm1173, 1, 0
    %v1302 = vsel %vm1174, 1, 0
    %v1303 = vsel %vm1175, 1, 0
    %v1304 = vsel %vm1176, 1, 0
    %v1305 = vsel %vm1177, 1, 0
    %v1306 = vsel %vm1178, 1, 0
    %v1307 = vsel %vm1179, 1, 0
    %v1308 = vsel %vm1180, 1, 0
    %v1309 = vsel %vm1181, 1, 0
    %v1310 = vsel %vm1182, 1, 0
    %v1311 = vsel %vm1183, 1, 0
    %v1312 = vsel %vm1184, 1, 0
    %v1313 = vsel %vm1185, 1, 0
    %v1314 = vsel %vm1186, 1, 0
    %v1315 = vsel %vm1187, 1, 0
    %v1316 = vsel %vm1188, 1, 0
    %v1317 = vsel %vm1189, 1, 0
    %v1318 = vsel %vm1190, 1, 0
    %v1319 = vsel %vm1191, 1, 0
    %v1320 = vsel %vm1192, 1, 0
    %v1321 = vsel %vm1193, 1, 0
    %v1322 = vsel %vm1194, 1, 0
    %v1323 = vsel %vm1195, 1, 0
    %v1324 = vsel %vm1196, 1, 0
    %v1325 = vsel %vm1197, 1, 0
    %v1326 = vsel %vm1198, 1, 0
    %v1327 = vsel %vm1199, 1, 0
    %v1328 = vsel %vm1200, 1, 0
    %v1329 = vsel %vm1201, 1, 0
    %v1330 = vsel %vm1202, 1, 0
    %v1331 = vsel %vm1203, 1, 0
    %v1332 = vsel %vm1204, 1, 0
    %v1333 = vsel %vm1205, 1, 0
    %v1334 = vsel %vm1206, 1, 0
    %v1335 = vsel %vm1207, 1, 0
    %v1336 = vsel %vm1208, 1, 0
    %v1337 = vsel %vm1209, 1, 0
    %v1338 = vsel %vm1210, 1, 0
    %v1339 = vsel %vm1211, 1, 0
    %v1340 = vsel %vm1212, 1, 0
    %v1341 = vsel %vm1213, 1, 0
    %v1342 = vsel %vm1214, 1, 0
    %v1343 = vsel %vm1215, 1, 0
    %v1344 = vsel %vm1216, 1, 0
    %v1345 = vsel %vm1217, 1, 0
    %v1346 = vsel %vm1218, 1, 0
    %v1347 = vsel %vm1219, 1, 0
    %v1348 = vsel %vm1220, 1, 0
    %v1349 = vsel %vm1221, 1, 0
    %v1350 = vsel %vm1222, 1, 0
    %v1351 = vsel %vm1223, 1, 0
    %v1352 = vsel %vm1224, 1, 0
    %v1353 = vsel %vm1225, 1, 0
    %v1354 = vsel %vm1226, 1, 0
    %v1355 = vsel %vm1227, 1, 0
    %v1356 = vsel %vm1228, 1, 0
    %v1357 = vsel %vm1229, 1, 0
    %v1358 = vsel %vm1230, 1, 0
    %v1359 = vsel %vm1231, 1, 0
    %v1360 = vsel %vm1232, 1, 0
    %v1361 = vsel %vm1233, 1, 0
    %v1362 = vsel %vm1234, 1, 0
    %v1363 = vsel %vm1235, 1, 0
    %v1364 = vsel %vm1236, 1, 0
    %v1365 = vsel %vm1237, 1, 0
    %v1366 = vsel %vm1238, 1, 0
    %v1367 = vsel %vm1239, 1, 0
    %v1368 = vsel %vm1240, 1, 0
    %v1369 = vsel %vm1241, 1, 0
    %v1370 = vsel %vm1242, 1, 0
    %v1371 = vsel %vm1243, 1, 0
    %v1372 = vsel %vm1244, 1, 0
    %v1373 = vsel %vm1245, 1, 0
    %v1374 = vsel %vm1246, 1, 0
    %v1375 = vsel %vm1247, 1, 0
    %v1376 = vsel %vm1248, 1, 0
    %v1377 = vsel %vm1249, 1, 0
    %v1378 = vsel %vm1250, 1, 0
    %v1379 = vsel %vm1251, 1, 0
    %v1380 = vsel %vm1252, 1, 0
    %v1381 = vsel %vm1253, 1, 0
    %v1382 = vsel %vm1254, 1, 0
    %v1383 = vsel %vm1255, 1, 0
    %v1384 = vsel %vm1256, 1, 0
    %v1385 = vsel %vm1257, 1, 0
    %v1386 = vsel %vm1258, 1, 0
    %v1387 = vsel %vm1259, 1, 0
    %v1388 = vsel %vm1260, 1, 0
    %v1389 = vsel %vm1261, 1, 0
    %v1390 = vsel %vm1262, 1, 0
    %v1391 = vsel %vm1263, 1, 0
    %v1392 = vsel %vm1264, 1, 0
    %v1393 = vsel %vm1265, 1, 0
    %v1394 = vsel %vm1266, 1, 0
    %v1395 = vsel %vm1267, 1, 0
    %v1396 = vsel %vm1268, 1, 0
    %v1397 = vsel %vm1269, 1, 0
    %v1398 = vsel %vm1270, 1, 0
    %v1399 = vsel %vm1271, 1, 0
    %v1400 = vsel %vm1272, 1, 0
    %v1401 = vsel %vm1273, 1, 0
    %v1402 = vsel %vm1274, 1, 0
    %v1403 = vsel %vm1275, 1, 0
    %v1404 = vsel %vm1276, 1, 0
    %v1405 = vsel %vm1277, 1, 0
    %v1406 = vsel %vm1278, 1, 0
    %v1407 = vsel %vm1279, 1, 0
    %v1408 = vsel %vm1280, 1, 0
    %v1409 = vsel %vm1281, 1, 0
    %v1410 = vcvt.s32.f32 %v1282
    %v1411 = vcvt.s32.f32 %v1283
    %v1412 = vcvt.s32.f32 %v1284
    %v1413 = vcvt.s32.f32 %v1285
    %v1414 = vcvt.s32.f32 %v1286
    %v1415 = vcvt.s32.f32 %v1287
    %v1416 = vcvt.s32.f32 %v1288
    %v1417 = vcvt.s32.f32 %v1289
    %v1418 = vcvt.s32.f32 %v1290
    %v1419 = vcvt.s32.f32 %v1291
    %v1420 = vcvt.s32.f32 %v1292
    %v1421 = vcvt.s32.f32 %v1293
    %v1422 = vcvt.s32.f32 %v1294
    %v1423 = vcvt.s32.f32 %v1295
    %v1424 = vcvt.s32.f32 %v1296
    %v1425 = vcvt.s32.f32 %v1297
    %v1426 = vcvt.s32.f32 %v1298
    %v1427 = vcvt.s32.f32 %v1299
    %v1428 = vcvt.s32.f32 %v1300
    %v1429 = vcvt.s32.f32 %v1301
    %v1430 = vcvt.s32.f32 %v1302
    %v1431 = vcvt.s32.f32 %v1303
    %v1432 = vcvt.s32.f32 %v1304
    %v1433 = vcvt.s32.f32 %v1305
    %v1434 = vcvt.s32.f32 %v1306
    %v1435 = vcvt.s32.f32 %v1307
    %v1436 = vcvt.s32.f32 %v1308
    %v1437 = vcvt.s32.f32 %v1309
    %v1438 = vcvt.s32.f32 %v1310
    %v1439 = vcvt.s32.f32 %v1311
    %v1440 = vcvt.s32.f32 %v1312
    %v1441 = vcvt.s32.f32 %v1313
    %v1442 = vcvt.s32.f32 %v1314
    %v1443 = vcvt.s32.f32 %v1315
    %v1444 = vcvt.s32.f32 %v1316
    %v1445 = vcvt.s32.f32 %v1317
    %v1446 = vcvt.s32.f32 %v1318
    %v1447 = vcvt.s32.f32 %v1319
    %v1448 = vcvt.s32.f32 %v1320
    %v1449 = vcvt.s32.f32 %v1321
    %v1450 = vcvt.s32.f32 %v1322
    %v1451 = vcvt.s32.f32 %v1323
    %v1452 = vcvt.s32.f32 %v1324
    %v1453 = vcvt.s32.f32 %v1325
    %v1454 = vcvt.s32.f32 %v1326
    %v1455 = vcvt.s32.f32 %v1327
    %v1456 = vcvt.s32.f32 %v1328
    %v1457 = vcvt.s32.f32 %v1329
    %v1458 = vcvt.s32.f32 %v1330
    %v1459 = vcvt.s32.f32 %v1331
    %v1460 = vcvt.s32.f32 %v1332
    %v1461 = vcvt.s32.f32 %v1333
    %v1462 = vcvt.s32.f32 %v1334
    %v1463 = vcvt.s32.f32 %v1335
    %v1464 = vcvt.s32.f32 %v1336
    %v1465 = vcvt.s32.f32 %v1337
    %v1466 = vcvt.s32.f32 %v1338
    %v1467 = vcvt.s32.f32 %v1339
    %v1468 = vcvt.s32.f32 %v1340
    %v1469 = vcvt.s32.f32 %v1341
    %v1470 = vcvt.s32.f32 %v1342
    %v1471 = vcvt.s32.f32 %v1343
    %v1472 = vcvt.s32.f32 %v1344
    %v1473 = vcvt.s32.f32 %v1345
    %v1474 = vcvt.s32.f32 %v1346
    %v1475 = vcvt.s32.f32 %v1347
    %v1476 = vcvt.s32.f32 %v1348
    %v1477 = vcvt.s32.f32 %v1349
    %v1478 = vcvt.s32.f32 %v1350
    %v1479 = vcvt.s32.f32 %v1351
    %v1480 = vcvt.s32.f32 %v1352
    %v1481 = vcvt.s32.f32 %v1353
    %v1482 = vcvt.s32.f32 %v1354
    %v1483 = vcvt.s32.f32 %v1355
    %v1484 = vcvt.s32.f32 %v1356
    %v1485 = vcvt.s32.f32 %v1357
    %v1486 = vcvt.s32.f32 %v1358
    %v1487 = vcvt.s32.f32 %v1359
    %v1488 = vcvt.s32.f32 %v1360
    %v1489 = vcvt.s32.f32 %v1361
    %v1490 = vcvt.s32.f32 %v1362
    %v1491 = vcvt.s32.f32 %v1363
    %v1492 = vcvt.s32.f32 %v1364
    %v1493 = vcvt.s32.f32 %v1365
    %v1494 = vcvt.s32.f32 %v1366
    %v1495 = vcvt.s32.f32 %v1367
    %v1496 = vcvt.s32.f32 %v1368
    %v1497 = vcvt.s32.f32 %v1369
    %v1498 = vcvt.s32.f32 %v1370
    %v1499 = vcvt.s32.f32 %v1371
    %v1500 = vcvt.s32.f32 %v1372
    %v1501 = vcvt.s32.f32 %v1373
    %v1502 = vcvt.s32.f32 %v1374
    %v1503 = vcvt.s32.f32 %v1375
    %v1504 = vcvt.s32.f32 %v1376
    %v1505 = vcvt.s32.f32 %v1377
    %v1506 = vcvt.s32.f32 %v1378
    %v1507 = vcvt.s32.f32 %v1379
    %v1508 = vcvt.s32.f32 %v1380
    %v1509 = vcvt.s32.f32 %v1381
    %v1510 = vcvt.s32.f32 %v1382
    %v1511 = vcvt.s32.f32 %v1383
    %v1512 = vcvt.s32.f32 %v1384
    %v1513 = vcvt.s32.f32 %v1385
    %v1514 = vcvt.s32.f32 %v1386
    %v1515 = vcvt.s32.f32 %v1387
    %v1516 = vcvt.s32.f32 %v1388
    %v1517 = vcvt.s32.f32 %v1389
    %v1518 = vcvt.s32.f32 %v1390
    %v1519 = vcvt.s32.f32 %v1391
    %v1520 = vcvt.s32.f32 %v1392
    %v1521 = vcvt.s32.f32 %v1393
    %v1522 = vcvt.s32.f32 %v1394
    %v1523 = vcvt.s32.f32 %v1395
    %v1524 = vcvt.s32.f32 %v1396
    %v1525 = vcvt.s32.f32 %v1397
    %v1526 = vcvt.s32.f32 %v1398
    %v1527 = vcvt.s32.f32 %v1399
    %v1528 = vcvt.s32.f32 %v1400
    %v1529 = vcvt.s32.f32 %v1401
    %v1530 = vcvt.s32.f32 %v1402
    %v1531 = vcvt.s32.f32 %v1403
    %v1532 = vcvt.s32.f32 %v1404
    %v1533 = vcvt.s32.f32 %v1405
    %v1534 = vcvt.s32.f32 %v1406
    %v1535 = vcvt.s32.f32 %v1407
    %v1536 = vcvt.s32.f32 %v1408
    %v1537 = vcvt.s32.f32 %v1409
    %v1538 = vadd.f32 %v1410, %v1411
    %v1539 = vadd.f32 %v1538, %v1412
    %v1540 = vadd.f32 %v1539, %v1413
    %v1541 = vadd.f32 %v1540, %v1414
    %v1542 = vadd.f32 %v1541, %v1415
    %v1543 = vadd.f32 %v1542, %v1416
    %v1544 = vadd.f32 %v1543, %v1417
    %v1545 = vadd.f32 %v1544, %v1418
    %v1546 = vadd.f32 %v1545, %v1419
    %v1547 = vadd.f32 %v1546, %v1420
    %v1548 = vadd.f32 %v1547, %v1421
    %v1549 = vadd.f32 %v1548, %v1422
    %v1550 = vadd.f32 %v1549, %v1423
    %v1551 = vadd.f32 %v1550, %v1424
    %v1552 = vadd.f32 %v1551, %v1425
    %v1553 = vrot.slane %v1552, 4
    %v1554 = vadd.f32 %v1552, %v1553
    %v1555 = vrot.slane %v1554, 2
    %v1556 = vadd.f32 %v1554, %v1555
    %v1557 = vrot.slane %v1556, 1
    %v1558 = vadd.f32 %v1556, %v1557
    %v1559 = vadd.f32 %v1426, %v1427
    %v1560 = vadd.f32 %v1559, %v1428
    %v1561 = vadd.f32 %v1560, %v1429
    %v1562 = vadd.f32 %v1561, %v1430
    %v1563 = vadd.f32 %v1562, %v1431
    %v1564 = vadd.f32 %v1563, %v1432
    %v1565 = vadd.f32 %v1564, %v1433
    %v1566 = vadd.f32 %v1565, %v1434
    %v1567 = vadd.f32 %v1566, %v1435
    %v1568 = vadd.f32 %v1567, %v1436
    %v1569 = vadd.f32 %v1568, %v1437
    %v1570 = vadd.f32 %v1569, %v1438
    %v1571 = vadd.f32 %v1570, %v1439
    %v1572 = vadd.f32 %v1571, %v1440
    %v1573 = vadd.f32 %v1572, %v1441
    %v1574 = vrot.slane %v1573, 4
    %v1575 = vadd.f32 %v1573, %v1574
    %v1576 = vrot.slane %v1575, 2
    %v1577 = vadd.f32 %v1575, %v1576
    %v1578 = vrot.slane %v1577, 1
    %v1579 = vadd.f32 %v1577, %v1578
    %v1580 = vadd.f32 %v1442, %v1443
    %v1581 = vadd.f32 %v1580, %v1444
    %v1582 = vadd.f32 %v1581, %v1445
    %v1583 = vadd.f32 %v1582, %v1446
    %v1584 = vadd.f32 %v1583, %v1447
    %v1585 = vadd.f32 %v1584, %v1448
    %v1586 = vadd.f32 %v1585, %v1449
    %v1587 = vadd.f32 %v1586, %v1450
    %v1588 = vadd.f32 %v1587, %v1451
    %v1589 = vadd.f32 %v1588, %v1452
    %v1590 = vadd.f32 %v1589, %v1453
    %v1591 = vadd.f32 %v1590, %v1454
    %v1592 = vadd.f32 %v1591, %v1455
    %v1593 = vadd.f32 %v1592, %v1456
    %v1594 = vadd.f32 %v1593, %v1457
    %v1595 = vrot.slane %v1594, 4
    %v1596 = vadd.f32 %v1594, %v1595
    %v1597 = vrot.slane %v1596, 2
    %v1598 = vadd.f32 %v1596, %v1597
    %v1599 = vrot.slane %v1598, 1
    %v1600 = vadd.f32 %v1598, %v1599
    %v1601 = vadd.f32 %v1458, %v1459
    %v1602 = vadd.f32 %v1601, %v1460
    %v1603 = vadd.f32 %v1602, %v1461
    %v1604 = vadd.f32 %v1603, %v1462
    %v1605 = vadd.f32 %v1604, %v1463
    %v1606 = vadd.f32 %v1605, %v1464
    %v1607 = vadd.f32 %v1606, %v1465
    %v1608 = vadd.f32 %v1607, %v1466
    %v1609 = vadd.f32 %v1608, %v1467
    %v1610 = vadd.f32 %v1609, %v1468
    %v1611 = vadd.f32 %v1610, %v1469
    %v1612 = vadd.f32 %v1611, %v1470
    %v1613 = vadd.f32 %v1612, %v1471
    %v1614 = vadd.f32 %v1613, %v1472
    %v1615 = vadd.f32 %v1614, %v1473
    %v1616 = vrot.slane %v1615, 4
    %v1617 = vadd.f32 %v1615, %v1616
    %v1618 = vrot.slane %v1617, 2
    %v1619 = vadd.f32 %v1617, %v1618
    %v1620 = vrot.slane %v1619, 1
    %v1621 = vadd.f32 %v1619, %v1620
    %v1622 = vadd.f32 %v1474, %v1475
    %v1623 = vadd.f32 %v1622, %v1476
    %v1624 = vadd.f32 %v1623, %v1477
    %v1625 = vadd.f32 %v1624, %v1478
    %v1626 = vadd.f32 %v1625, %v1479
    %v1627 = vadd.f32 %v1626, %v1480
    %v1628 = vadd.f32 %v1627, %v1481
    %v1629 = vadd.f32 %v1628, %v1482
    %v1630 = vadd.f32 %v1629, %v1483
    %v1631 = vadd.f32 %v1630, %v1484
    %v1632 = vadd.f32 %v1631, %v1485
    %v1633 = vadd.f32 %v1632, %v1486
    %v1634 = vadd.f32 %v1633, %v1487
    %v1635 = vadd.f32 %v1634, %v1488
    %v1636 = vadd.f32 %v1635, %v1489
    %v1637 = vrot.slane %v1636, 4
    %v1638 = vadd.f32 %v1636, %v1637
    %v1639 = vrot.slane %v1638, 2
    %v1640 = vadd.f32 %v1638, %v1639
    %v1641 = vrot.slane %v1640, 1
    %v1642 = vadd.f32 %v1640, %v1641
    %v1643 = vadd.f32 %v1490, %v1491
    %v1644 = vadd.f32 %v1643, %v1492
    %v1645 = vadd.f32 %v1644, %v1493
    %v1646 = vadd.f32 %v1645, %v1494
    %v1647 = vadd.f32 %v1646, %v1495
    %v1648 = vadd.f32 %v1647, %v1496
    %v1649 = vadd.f32 %v1648, %v1497
    %v1650 = vadd.f32 %v1649, %v1498
    %v1651 = vadd.f32 %v1650, %v1499
    %v1652 = vadd.f32 %v1651, %v1500
    %v1653 = vadd.f32 %v1652, %v1501
    %v1654 = vadd.f32 %v1653, %v1502
    %v1655 = vadd.f32 %v1654, %v1503
    %v1656 = vadd.f32 %v1655, %v1504
    %v1657 = vadd.f32 %v1656, %v1505
    %v1658 = vrot.slane %v1657, 4
    %v1659 = vadd.f32 %v1657, %v1658
    %v1660 = vrot.slane %v1659, 2
    %v1661 = vadd.f32 %v1659, %v1660
    %v1662 = vrot.slane %v1661, 1
    %v1663 = vadd.f32 %v1661, %v1662
    %v1664 = vadd.f32 %v1506, %v1507
    %v1665 = vadd.f32 %v1664, %v1508
    %v1666 = vadd.f32 %v1665, %v1509
    %v1667 = vadd.f32 %v1666, %v1510
    %v1668 = vadd.f32 %v1667, %v1511
    %v1669 = vadd.f32 %v1668, %v1512
    %v1670 = vadd.f32 %v1669, %v1513
    %v1671 = vadd.f32 %v1670, %v1514
    %v1672 = vadd.f32 %v1671, %v1515
    %v1673 = vadd.f32 %v1672, %v1516
    %v1674 = vadd.f32 %v1673, %v1517
    %v1675 = vadd.f32 %v1674, %v1518
    %v1676 = vadd.f32 %v1675, %v1519
    %v1677 = vadd.f32 %v1676, %v1520
    %v1678 = vadd.f32 %v1677, %v1521
    %v1679 = vrot.slane %v1678, 4
    %v1680 = vadd.f32 %v1678, %v1679
    %v1681 = vrot.slane %v1680, 2
    %v1682 = vadd.f32 %v1680, %v1681
    %v1683 = vrot.slane %v1682, 1
    %v1684 = vadd.f32 %v1682, %v1683
    %v1685 = vadd.f32 %v1522, %v1523
    %v1686 = vadd.f32 %v1685, %v1524
    %v1687 = vadd.f32 %v1686, %v1525
    %v1688 = vadd.f32 %v1687, %v1526
    %v1689 = vadd.f32 %v1688, %v1527
    %v1690 = vadd.f32 %v1689, %v1528
    %v1691 = vadd.f32 %v1690, %v1529
    %v1692 = vadd.f32 %v1691, %v1530
    %v1693 = vadd.f32 %v1692, %v1531
    %v1694 = vadd.f32 %v1693, %v1532
    %v1695 = vadd.f32 %v1694, %v1533
    %v1696 = vadd.f32 %v1695, %v1534
    %v1697 = vadd.f32 %v1696, %v1535
    %v1698 = vadd.f32 %v1697, %v1536
    %v1699 = vadd.f32 %v1698, %v1537
    %v1700 = vrot.slane %v1699, 4
    %v1701 = vadd.f32 %v1699, %v1700
    %v1702 = vrot.slane %v1701, 2
    %v1703 = vadd.f32 %v1701, %v1702
    %v1704 = vrot.slane %v1703, 1
    %v1705 = vadd.f32 %v1703, %v1704
    %v1706 = vadd.f32 %v1558, 0.0
    %v1707 = vadd.f32 %v1579, 0.0
    %v1708 = vadd.f32 %v1600, 0.0
    %v1709 = vadd.f32 %v1621, 0.0
    %v1710 = vadd.f32 %v1642, 0.0
    %v1711 = vadd.f32 %v1663, 0.0
    %v1712 = vadd.f32 %v1684, 0.0
    %v1713 = vadd.f32 %v1705, 0.0
    %v1714 = vmul.f32 %v1706, 0.029032258
    %v1715 = vmul.f32 %v1707, 0.029032258
    %v1716 = vmul.f32 %v1708, 0.029032258
    %v1717 = vmul.f32 %v1709, 0.029032258
    %v1718 = vmul.f32 %v1710, 0.029032258
    %v1719 = vmul.f32 %v1711, 0.029032258
    %v1720 = vmul.f32 %v1712, 0.029032258
    %v1721 = vmul.f32 %v1713, 0.029032258
    %v1722 = vsub.f32 1.0, %v1714
    %v1723 = vsub.f32 1.0, %v1715
    %v1724 = vsub.f32 1.0, %v1716
    %v1725 = vsub.f32 1.0, %v1717
    %v1726 = vsub.f32 1.0, %v1718
    %v1727 = vsub.f32 1.0, %v1719
    %v1728 = vsub.f32 1.0, %v1720
    %v1729 = vsub.f32 1.0, %v1721
    %v1730 = vmul.f32 %v1722, 0.056818184
    %v1731 = vmul.f32 %v1723, 0.056818184
    %v1732 = vmul.f32 %v1724, 0.056818184
    %v1733 = vmul.f32 %v1725, 0.056818184
    %v1734 = vmul.f32 %v1726, 0.056818184
    %v1735 = vmul.f32 %v1727, 0.056818184
    %v1736 = vmul.f32 %v1728, 0.056818184
    %v1737 = vmul.f32 %v1729, 0.056818184
    %v1739 = vrot.slane %v52, 1
    %v1740 = vrot.slane %v52, 2
    %v1741 = vrot.slane %v52, 3
    %v1742 = vrot.slane %v52, 4
    %v1743 = vrot.slane %v52, 5
    %v1744 = vrot.slane %v52, 6
    %v1745 = vrot.slane %v52, 7
    %v1754 = vmul.f32 %v1730, %v52
    %v1755 = vmul.f32 %v1731, %v1739
    %v1756 = vmul.f32 %v1732, %v1740
    %v1757 = vmul.f32 %v1733, %v1741
    %v1758 = vmul.f32 %v1734, %v1742
    %v1759 = vmul.f32 %v1735, %v1743
    %v1760 = vmul.f32 %v1736, %v1744
    %v1761 = vmul.f32 %v1737, %v1745
    %v1763 = vrot.slane %v30, 1
    %v1764 = vrot.slane %v30, 2
    %v1765 = vrot.slane %v30, 3
    %v1766 = vrot.slane %v30, 4
    %v1767 = vrot.slane %v30, 5
    %v1768 = vrot.slane %v30, 6
    %v1769 = vrot.slane %v30, 7
    %v1778 = vmul.f32 %v1754, %v30
    %v1779 = vmul.f32 %v1755, %v1763
    %v1780 = vmul.f32 %v1756, %v1764
    %v1781 = vmul.f32 %v1757, %v1765
    %v1782 = vmul.f32 %v1758, %v1766
    %v1783 = vmul.f32 %v1759, %v1767
    %v1784 = vmul.f32 %v1760, %v1768
    %v1785 = vmul.f32 %v1761, %v1769
    %v1794 = vrot.slane %v1779, 7
    %vm1795 = vcmask 1041409
    %v1796 = vsel %vm1795, %v1794, %v1778
    %v1797 = vrot.slane %v1780, 6
    %vm1798 = vcmask 1042434
    %v1799 = vsel %vm1798, %v1797, %v1796
    %v1800 = vrot.slane %v1781, 5
    %vm1801 = vcmask 1043459
    %v1802 = vsel %vm1801, %v1800, %v1799
    %v1803 = vrot.slane %v1782, 4
    %vm1804 = vcmask 1044484
    %v1805 = vsel %vm1804, %v1803, %v1802
    %v1806 = vrot.slane %v1783, 3
    %vm1807 = vcmask 1045509
    %v1808 = vsel %vm1807, %v1806, %v1805
    %v1809 = vrot.slane %v1784, 2
    %vm1810 = vcmask 1046534
    %v1811 = vsel %vm1810, %v1809, %v1808
    %v1812 = vrot.slane %v1785, 1
    %vm1813 = vcmask 1047559
    %v1814 = vsel %vm1813, %v1812, %v1811
    %1816 = vst [vmem:[#allocation7] sm:$0xff] %v1814
    // Predicated region
    $region18: #{tpu_custom_call.1} parent=1 // pred_check
      _
    $region19: #{tpu_custom_call.1} parent=1 // pred_check_branch
      %1818 = sbr.rel (0) target = $region21
    $region20: #{tpu_custom_call.1} parent=1 // pred_region
      %s1820 = ssub.s32 128, 128
      %1821 = vsyncadd [#allocation5], %s1820
      %s1823 = sshll.u32 [#allocation6], 4
      %s1824 = int_to_ptr.vmem [resolvable:$true] %s1823
      %1826 = dma.vmem_to_hbm [thread:$0]  %s1824, 128, %s3, [#allocation5]
    $region21: #{tpu_custom_call.1} parent=1 // pred_fallthru
      _
    // Predicated region
    $region22: #{tpu_custom_call.1} parent=1 // pred_check
      _
    $region23: #{tpu_custom_call.1} parent=1 // pred_check_branch
      %1828 = sbr.rel (0) target = $region25
    $region24: #{tpu_custom_call.1} parent=1 // pred_region
      %s1830 = ssub.s32 128, 128
      %1831 = vsyncadd [#allocation8], %s1830
      %s1833 = sshll.u32 [#allocation7], 4
      %s1834 = int_to_ptr.vmem [resolvable:$true] %s1833
      %1836 = dma.vmem_to_hbm [thread:$0]  %s1834, 128, %s4, [#allocation8]
    $region25: #{tpu_custom_call.1} parent=1 // pred_fallthru
      _
    // Predicated region
    $region26: #{tpu_custom_call.1} parent=1 // pred_check
      _
    $region27: #{tpu_custom_call.1} parent=1 // pred_check_branch
      %1838 = sbr.rel (0) target = $region29
    $region28: #{tpu_custom_call.1} parent=1 // pred_region
      %1839 = dma.done [#allocation5], 128
    $region29: #{tpu_custom_call.1} parent=1 // pred_fallthru
      _
    // Predicated region
    $region30: #{tpu_custom_call.1} parent=1 // pred_check
      _
    $region31: #{tpu_custom_call.1} parent=1 // pred_check_branch
      %1841 = sbr.rel (0) target = $region33
    $region32: #{tpu_custom_call.1} parent=1 // pred_region
      %1842 = dma.done [#allocation8], 128
    $region33: #{tpu_custom_call.1} parent=1 // pred_fallthru
      _
    %1843 = vsyncpa [#allocation4], 1
    %1844 = vsyncpa [#allocation5], 1
    %1845 = vsyncpa [#allocation8], 1

</llo_original>
